<compile_context>
chip_gen: v7x
topology: tpu7x:2x2x1
jax: 0.10.0
libtpu: 0.0.40
codegen_flags: <defaults>
</compile_context>

<pallas_src>
import functools

import jax
import jax.numpy as jnp
from jax.experimental import pallas as pl
from jax.experimental.pallas import tpu as pltpu

EPS = 1e-5
MAX_NORM = 1.0 - 1e-5
LN_EPS = 1e-5
BIG = 1e30


# ---------- in-kernel math helpers (pure jnp, traced inside the kernel) ----------

def _artanh(r):
    # operates on (TN, 1) norms only -> keep the exact divide (negligible VALU cost)
    r = jnp.clip(r, 0.0, MAX_NORM)
    return 0.5 * jnp.log((1.0 + r) / (1.0 - r))


def _log_map0(x):
    # zero-padded lanes contribute 0 to the norm, so padding is transparent here
    n = jnp.sqrt(jnp.sum(x * x, axis=-1, keepdims=True))
    return (_artanh(n) / jnp.maximum(n, EPS)) * x


def _exp_map0(v):
    n = jnp.sqrt(jnp.sum(v * v, axis=-1, keepdims=True))
    return (jnp.tanh(n) / jnp.maximum(n, EPS)) * v


def _layernorm_masked(h, gamma, beta, n_real):
    """LayerNorm over the last axis, statistics computed only over the first n_real
    (real, unpadded) columns.  Padded columns of h are exactly 0, gamma/beta padded with 0,
    so padded outputs stay 0."""
    n_pad = h.shape[-1]
    if n_pad == n_real:
        mu = jnp.mean(h, axis=-1, keepdims=True)
        var = jnp.mean((h - mu) * (h - mu), axis=-1, keepdims=True)
    else:
        col = jax.lax.broadcasted_iota(jnp.int32, h.shape, 1)
        mask = col < n_real
        inv = jnp.float32(1.0 / n_real)
        mu = jnp.sum(h, axis=-1, keepdims=True) * inv
        var = jnp.sum(jnp.where(mask, (h - mu) * (h - mu), 0.0),
                      axis=-1, keepdims=True) * inv
    return (h - mu) * jax.lax.rsqrt(var + LN_EPS) * gamma + beta


def _gelu_tanh(x):
    # tanh-approx GELU: routes the transcendental to the EUP (free bundle slot on TPU)
    c = jnp.float32(0.7978845608028654)  # sqrt(2/pi)
    return 0.5 * x * (1.0 + jnp.tanh(c * (x + 0.044715 * x * x * x)))


def _mlp(t, w1, b1, gamma, beta, w2, b2, h2_real):
    # MXU operands in the weights' dtype (bf16), f32 accumulation; elementwise math f32.
    h = jnp.dot(t.astype(w1.dtype), w1, preferred_element_type=jnp.float32) + b1
    h = _layernorm_masked(h, gamma, beta, h2_real)
    h = _gelu_tanh(h)
    return jnp.dot(h.astype(w2.dtype), w2, preferred_element_type=jnp.float32) + b2


# ---------- the Pallas kernel ----------

def pattern_learner_kernel(
    x_ref,
    we1_ref, be1_ref, ge_ref, bte_ref, we2_ref, be2_ref,      # encoder params
    mem_ref, msq_ref, imp_ref,                                # bf16 memory, |m|^2, sigmoid(importance)
    wd1_ref, bd1_ref, gd_ref, btd_ref, wd2_ref, bd2_ref,      # decoder params
    out_ref, pat_ref,
    *, top_k: int, h2_real: int, p_real: int,
):
    x = x_ref[...].astype(jnp.float32)                        # (TN, Hp)

    # ---- encode_pattern: log_map0 -> Linear/LN/GELU/Linear -> exp_map0
    t = _log_map0(x)
    t = _mlp(t, we1_ref[...], be1_ref[...], ge_ref[...], bte_ref[...],
             we2_ref[...], be2_ref[...], h2_real)
    pattern = _exp_map0(t)                                    # (TN, Hp), on the ball
    pat_ref[...] = pattern.astype(pat_ref.dtype)

    mem = mem_ref[...]                                        # (Pp, Hp) bf16, MXU operand only
    m_sq = msq_ref[...]                                       # (1, Pp)  f32, precomputed in wrapper
    imp_sig = imp_ref[...]                                    # (1, Pp)  f32
    tn = pattern.shape[0]
    num_p = mem.shape[0]

    # ---- importance-weighted hyperbolic distance matrix (TN, Pp); matmul bf16, rest f32
    p_sq = jnp.sum(pattern * pattern, axis=-1, keepdims=True)          # (TN, 1)
    cross = jax.lax.dot_general(pattern.astype(mem.dtype), mem,
                                (((1,), (1,)), ((), ())),
                                preferred_element_type=jnp.float32)    # (TN, Pp)
    diff_sq = jnp.maximum(p_sq + m_sq - 2.0 * cross, 0.0)
    denom = jnp.maximum((1.0 - p_sq) * (1.0 - m_sq), EPS)
    # divide -> EUP reciprocal; keeps the VALU slots free on the biggest elementwise array
    z = jnp.maximum(1.0 + 2.0 * diff_sq * pl.reciprocal(denom, approx=True), 1.0)
    dist = jnp.log(z + jnp.sqrt((z - 1.0) * (z + 1.0)))                # arccosh(z)
    wdist = dist * imp_sig                                             # weighted distance

    iota = jax.lax.broadcasted_iota(jnp.int32, (tn, num_p), 1)
    if p_real != num_p:
        # padded memory slots must never be selected
        wdist = jnp.where(iota < p_real, wdist, BIG)

    # ---- per-token top_k smallest distances -> accumulate a (TN, Pp) weight matrix,
    #      then a single MXU matmul against the memory.  Rolled loop: the (TN, Pp)
    #      carries stay as one live copy instead of top_k spilled copies.
    def _select_body(_, carry):
        d, w = carry
        dmin = jnp.min(d, axis=-1, keepdims=True)                      # (TN, 1)
        idx = jnp.min(jnp.where(d == dmin, iota, num_p), axis=-1, keepdims=True)
        sel = iota == idx                                              # one-hot (TN, Pp)
        w = w + jnp.where(sel, jnp.exp(-dmin), 0.0)
        d = jnp.where(sel, BIG, d)
        return d, w

    _, wmat = jax.lax.fori_loop(0, top_k, _select_body,
                                (wdist, jnp.zeros_like(wdist)))
    processed = jnp.dot(wmat.astype(mem.dtype), mem,
                        preferred_element_type=jnp.float32)            # (TN, Hp)

    # ---- decode_pattern: log_map0 -> Linear/LN/GELU/Linear -> exp_map0
    td = _log_map0(processed)
    td = _mlp(td, wd1_ref[...], bd1_ref[...], gd_ref[...], btd_ref[...],
              wd2_ref[...], bd2_ref[...], h2_real)
    out_ref[...] = _exp_map0(td).astype(out_ref.dtype)


# ---------- wrapper ----------

def _round_up(v, m):
    return ((v + m - 1) // m) * m


def _tpu_vmem_capacity_bytes(default=128 * 1024 * 1024):
    try:
        cap = getattr(pltpu.get_tpu_info(), "vmem_capacity_bytes", None)
        if cap:
            return int(cap)
    except Exception:
        pass
    return default


def pattern_learner_forward(x, params, *, top_k, token_tile=None,
                            mxu_dtype=jnp.bfloat16):
    """x: (B, S, H) float32.  Returns (output, pattern), both (B, S, H)."""
    B, S, H = x.shape
    (we1, be1, ge, bte, we2, be2, mem, imp_sig,
     wd1, bd1, gd, btd, wd2, bd2) = params
    P = mem.shape[0]
    H2 = we1.shape[1]
    top_k = min(top_k, P)

    # lane-dense padding of the feature axes (padded columns are exact zeros)
    Hp = _round_up(H, 128)
    H2p = _round_up(H2, 128)
    Pp = _round_up(P, 128)
    # TODO(synk): on v6e/v7x with P or H2 above 128, padding Pp/H2p to multiples of 256
    # would better fill the 2x256^2 MXU; left at 128 since it also pads real FLOPs.

    # Generation-aware VMEM budget + default token tile: v5e/v6e (128 MiB) -> 512-token
    # tile; v7x (64 MiB) -> 256.  Ask for ~80% of physical, never the whole scratchpad.
    vmem_cap = _tpu_vmem_capacity_bytes()
    vmem_limit = int(vmem_cap * 0.8)
    if token_tile is None:
        token_tile = 512 if vmem_cap >= 96 * 1024 * 1024 else 256

    N = B * S
    # Clamp the tile so the grid always has >= 2 steps (v7x megacore needs >= 2 parallel
    # iterations to use both TensorCores), while never exceeding token_tile.
    tn = max(8, min(token_tile, _round_up(-(-N // 2), 8)))
    N_pad = _round_up(N, tn)

    f32 = jnp.float32

    def pad2(a, rows, cols, dt=f32):
        a = a.astype(f32)
        a = jnp.pad(a, ((0, rows - a.shape[0]), (0, cols - a.shape[1])))
        return a.astype(dt)

    # TODO(synk): for bandwidth-bound small-H configs (esp. v5e), stream x / write pat in
    # bf16 at the kernel boundary to halve HBM traffic.
    x_flat = jnp.pad(x.reshape(N, H).astype(f32),
                     ((0, N_pad - N), (0, Hp - H)))

    # hoist the memory squared norms out of the kernel (loop-invariant)
    mem_f32 = mem.astype(f32)
    mem_sq = jnp.sum(mem_f32 * mem_f32, axis=-1)[None, :]              # (1, P)

    # weight matrices + pattern memory -> bf16 MXU operands (halves DMA + VMEM);
    # biases/gammas/norms/importance stay f32
    kparams = (
        pad2(we1, Hp, H2p, mxu_dtype), pad2(be1, 1, H2p),
        pad2(ge, 1, H2p), pad2(bte, 1, H2p),
        pad2(we2, H2p, Hp, mxu_dtype), pad2(be2, 1, Hp),
        pad2(mem, Pp, Hp, mxu_dtype),
        pad2(mem_sq, 1, Pp),
        pad2(imp_sig, 1, Pp),
        pad2(wd1, Hp, H2p, mxu_dtype), pad2(bd1, 1, H2p),
        pad2(gd, 1, H2p), pad2(btd, 1, H2p),
        pad2(wd2, H2p, Hp, mxu_dtype), pad2(bd2, 1, Hp),
    )

    tok_spec = pl.BlockSpec((tn, Hp), lambda i: (i, 0))
    # Constant-index parameters: single-buffered -- their index_map never changes, so a
    # second pipeline buffer is pure VMEM waste.
    # TODO(synk): for very large H (e.g. H >= 2048 on v7x), stage the four Hp x H2p weights
    # and mem via memory_space=pl.ANY + one-time make_async_copy into persistent scratch.
    in_specs = [tok_spec] + [
        pl.BlockSpec(p.shape, lambda i: (0, 0), pipeline_mode=pl.Buffered(1))
        for p in kparams
    ]
    out_specs = [tok_spec, tok_spec]
    out_shape = (jax.ShapeDtypeStruct((N_pad, Hp), jnp.float32),
                 jax.ShapeDtypeStruct((N_pad, Hp), jnp.float32))

    out, pat = pl.pallas_call(
        functools.partial(pattern_learner_kernel,
                          top_k=top_k, h2_real=H2, p_real=P),
        grid=(N_pad // tn,),
        in_specs=in_specs,
        out_specs=out_specs,
        out_shape=out_shape,
        compiler_params=pltpu.CompilerParams(
            dimension_semantics=("parallel",),
            vmem_limit_bytes=vmem_limit,
        ),
    )(x_flat, *kparams)

    out = out[:N, :H].reshape(B, S, H)
    pat = pat[:N, :H].reshape(B, S, H)
    return out, pat


# ---------- deterministic parameter construction (glue, plain JAX) ----------

def make_params(key, hidden_size, num_patterns):
    H, P = hidden_size, num_patterns
    ks = jax.random.split(key, 8)

    def linear(k, fan_in, fan_out):
        kw, kb = jax.random.split(k)
        bound = 1.0 / jnp.sqrt(jnp.float32(fan_in))
        w = jax.random.uniform(kw, (fan_in, fan_out), jnp.float32, -bound, bound)
        b = jax.random.uniform(kb, (1, fan_out), jnp.float32, -bound, bound)
        return w, b

    # encoder: Linear(H, 2H), LayerNorm(2H), GELU, Linear(2H, H)
    we1, be1 = linear(ks[0], H, 2 * H)
    ge, bte = jnp.ones((1, 2 * H), jnp.float32), jnp.zeros((1, 2 * H), jnp.float32)
    we2, be2 = linear(ks[1], 2 * H, H)
    # decoder: same structure
    wd1, bd1 = linear(ks[2], H, 2 * H)
    gd, btd = jnp.ones((1, 2 * H), jnp.float32), jnp.zeros((1, 2 * H), jnp.float32)
    wd2, bd2 = linear(ks[3], 2 * H, H)
    # pattern memory = exp_map0(randn * 0.02); importance = ones -> pass sigmoid(importance)
    mem = _exp_map0(jax.random.normal(ks[4], (P, H), jnp.float32) * 0.02)
    imp_sig = jax.nn.sigmoid(jnp.ones((1, P), jnp.float32))

    return (we1, be1, ge, bte, we2, be2, mem, imp_sig,
            wd1, bd1, gd, btd, wd2, bd2)


if __name__ == "__main__":
    B, S, H = 2, 8, 32        # batch, seq, hidden_size
    P = 16                    # num_patterns
    TOP_K = 4                 # pattern_top_k

    key = jax.random.PRNGKey(0)
    kx, kp = jax.random.split(key)
    x = jax.random.normal(kx, (B, S, H), jnp.float32) * 0.1   # well inside the unit ball
    params = make_params(kp, H, P)

    output, pattern = pattern_learner_forward(x, params, top_k=TOP_K)
    jax.block_until_ready((output, pattern))
    assert output.shape == (B, S, H) and pattern.shape == (B, S, H)
    assert bool(jnp.all(jnp.isfinite(output))) and bool(jnp.all(jnp.isfinite(pattern)))
    print("KERNEL_OK")
</pallas_src>

<mosaic_0001>
module attributes {stable_mosaic.version = 11 : i64} {
  func.func @pattern_learner_kernel(%arg0: i32, %arg1: memref<8x128xf32, #tpu.memory_space<vmem>>, %arg2: memref<128x128xbf16, #tpu.memory_space<vmem>>, %arg3: memref<1x128xf32, #tpu.memory_space<vmem>>, %arg4: memref<1x128xf32, #tpu.memory_space<vmem>>, %arg5: memref<1x128xf32, #tpu.memory_space<vmem>>, %arg6: memref<128x128xbf16, #tpu.memory_space<vmem>>, %arg7: memref<1x128xf32, #tpu.memory_space<vmem>>, %arg8: memref<128x128xbf16, #tpu.memory_space<vmem>>, %arg9: memref<1x128xf32, #tpu.memory_space<vmem>>, %arg10: memref<1x128xf32, #tpu.memory_space<vmem>>, %arg11: memref<128x128xbf16, #tpu.memory_space<vmem>>, %arg12: memref<1x128xf32, #tpu.memory_space<vmem>>, %arg13: memref<1x128xf32, #tpu.memory_space<vmem>>, %arg14: memref<1x128xf32, #tpu.memory_space<vmem>>, %arg15: memref<128x128xbf16, #tpu.memory_space<vmem>>, %arg16: memref<1x128xf32, #tpu.memory_space<vmem>>, %arg17: memref<8x128xf32, #tpu.memory_space<vmem>>, %arg18: memref<8x128xf32, #tpu.memory_space<vmem>>) attributes {dimension_semantics = [#tpu.dimension_semantics<parallel>], iteration_bounds = array<i64: 2>, scalar_prefetch = 0 : i64, scratch_operands = 0 : i64, tpu.core_type = #tpu.core_type<tc>, window_params = [{transform_indices = @transform_0, window_bounds = array<i64: 8, 128>}, {pipeline_mode = #tpu.pipeline_mode<synchronous>, transform_indices = @transform_1, window_bounds = array<i64: 128, 128>}, {pipeline_mode = #tpu.pipeline_mode<synchronous>, transform_indices = @transform_2, window_bounds = array<i64: 1, 128>}, {pipeline_mode = #tpu.pipeline_mode<synchronous>, transform_indices = @transform_3, window_bounds = array<i64: 1, 128>}, {pipeline_mode = #tpu.pipeline_mode<synchronous>, transform_indices = @transform_4, window_bounds = array<i64: 1, 128>}, {pipeline_mode = #tpu.pipeline_mode<synchronous>, transform_indices = @transform_5, window_bounds = array<i64: 128, 128>}, {pipeline_mode = #tpu.pipeline_mode<synchronous>, transform_indices = @transform_6, window_bounds = array<i64: 1, 128>}, {pipeline_mode = #tpu.pipeline_mode<synchronous>, transform_indices = @transform_7, window_bounds = array<i64: 128, 128>}, {pipeline_mode = #tpu.pipeline_mode<synchronous>, transform_indices = @transform_8, window_bounds = array<i64: 1, 128>}, {pipeline_mode = #tpu.pipeline_mode<synchronous>, transform_indices = @transform_9, window_bounds = array<i64: 1, 128>}, {pipeline_mode = #tpu.pipeline_mode<synchronous>, transform_indices = @transform_10, window_bounds = array<i64: 128, 128>}, {pipeline_mode = #tpu.pipeline_mode<synchronous>, transform_indices = @transform_11, window_bounds = array<i64: 1, 128>}, {pipeline_mode = #tpu.pipeline_mode<synchronous>, transform_indices = @transform_12, window_bounds = array<i64: 1, 128>}, {pipeline_mode = #tpu.pipeline_mode<synchronous>, transform_indices = @transform_13, window_bounds = array<i64: 1, 128>}, {pipeline_mode = #tpu.pipeline_mode<synchronous>, transform_indices = @transform_14, window_bounds = array<i64: 128, 128>}, {pipeline_mode = #tpu.pipeline_mode<synchronous>, transform_indices = @transform_15, window_bounds = array<i64: 1, 128>}, {transform_indices = @transform_16, window_bounds = array<i64: 8, 128>}, {transform_indices = @transform_17, window_bounds = array<i64: 8, 128>}]} {
    %c0 = arith.constant 0 : index
    %c0_0 = arith.constant 0 : index
    %0 = vector.load %arg1[%c0, %c0_0] : memref<8x128xf32, #tpu.memory_space<vmem>>, vector<8x128xf32>
    %1 = arith.mulf %0, %0 : vector<8x128xf32>
    %cst = arith.constant dense<0.000000e+00> : vector<8xf32>
    %2 = vector.multi_reduction <add>, %1, %cst [1] : vector<8x128xf32> to vector<8xf32>
    %3 = vector.shape_cast %2 : vector<8xf32> to vector<8x1xf32>
    %4 = math.sqrt %3 : vector<8x1xf32>
    %cst_1 = arith.constant 0.000000e+00 : f32
    %cst_2 = arith.constant 0.999989986 : f32
    %5 = vector.broadcast %cst_1 : f32 to vector<8x1xf32>
    %6 = arith.maximumf %5, %4 : vector<8x1xf32>
    %7 = vector.broadcast %cst_2 : f32 to vector<8x1xf32>
    %8 = arith.minimumf %7, %6 : vector<8x1xf32>
    %cst_3 = arith.constant 1.000000e+00 : f32
    %9 = vector.broadcast %cst_3 : f32 to vector<8x1xf32>
    %10 = arith.addf %9, %8 : vector<8x1xf32>
    %cst_4 = arith.constant 1.000000e+00 : f32
    %11 = vector.broadcast %cst_4 : f32 to vector<8x1xf32>
    %12 = arith.subf %11, %8 : vector<8x1xf32>
    %13 = arith.divf %10, %12 : vector<8x1xf32>
    %14 = math.log %13 : vector<8x1xf32>
    %cst_5 = arith.constant 5.000000e-01 : f32
    %15 = vector.broadcast %cst_5 : f32 to vector<8x1xf32>
    %16 = arith.mulf %15, %14 : vector<8x1xf32>
    %cst_6 = arith.constant 9.99999974E-6 : f32
    %17 = vector.broadcast %cst_6 : f32 to vector<8x1xf32>
    %18 = arith.maximumf %4, %17 : vector<8x1xf32>
    %19 = arith.divf %16, %18 : vector<8x1xf32>
    %20 = vector.broadcast %19 : vector<8x1xf32> to vector<8x128xf32>
    %21 = arith.mulf %20, %0 : vector<8x128xf32>
    %c0_7 = arith.constant 0 : index
    %c0_8 = arith.constant 0 : index
    %22 = vector.load %arg2[%c0_7, %c0_8] : memref<128x128xbf16, #tpu.memory_space<vmem>>, vector<128x128xbf16>
    %c0_9 = arith.constant 0 : index
    %c0_10 = arith.constant 0 : index
    %23 = vector.load %arg3[%c0_9, %c0_10] : memref<1x128xf32, #tpu.memory_space<vmem>>, vector<1x128xf32>
    %c0_11 = arith.constant 0 : index
    %c0_12 = arith.constant 0 : index
    %24 = vector.load %arg4[%c0_11, %c0_12] : memref<1x128xf32, #tpu.memory_space<vmem>>, vector<1x128xf32>
    %c0_13 = arith.constant 0 : index
    %c0_14 = arith.constant 0 : index
    %25 = vector.load %arg5[%c0_13, %c0_14] : memref<1x128xf32, #tpu.memory_space<vmem>>, vector<1x128xf32>
    %c0_15 = arith.constant 0 : index
    %c0_16 = arith.constant 0 : index
    %26 = vector.load %arg6[%c0_15, %c0_16] : memref<128x128xbf16, #tpu.memory_space<vmem>>, vector<128x128xbf16>
    %c0_17 = arith.constant 0 : index
    %c0_18 = arith.constant 0 : index
    %27 = vector.load %arg7[%c0_17, %c0_18] : memref<1x128xf32, #tpu.memory_space<vmem>>, vector<1x128xf32>
    %28 = arith.truncf %21 : vector<8x128xf32> to vector<8x128xbf16>
    %cst_19 = arith.constant dense<0.000000e+00> : vector<8x128xf32>
    %29 = tpu.matmul %28, %22, %cst_19 {dimension_numbers = #tpu.dot_dimension_numbers<[1], [0], [0], [1], [0, 0, 1, 1], [], []>} : vector<8x128xbf16>, vector<128x128xbf16>, vector<8x128xf32> -> vector<8x128xf32>
    %30 = vector.broadcast %23 : vector<1x128xf32> to vector<8x128xf32>
    %31 = arith.addf %29, %30 : vector<8x128xf32>
    %32 = tpu.iota {dimensions = array<i32: 1>} : vector<8x128xi32>
    %c64_i32 = arith.constant 64 : i32
    %33 = vector.broadcast %c64_i32 : i32 to vector<8x128xi32>
    %34 = arith.cmpi slt, %32, %33 : vector<8x128xi32>
    %cst_20 = arith.constant dense<0.000000e+00> : vector<8xf32>
    %35 = vector.multi_reduction <add>, %31, %cst_20 [1] : vector<8x128xf32> to vector<8xf32>
    %36 = vector.shape_cast %35 : vector<8xf32> to vector<8x1xf32>
    %cst_21 = arith.constant 1.562500e-02 : f32
    %37 = vector.broadcast %cst_21 : f32 to vector<8x1xf32>
    %38 = arith.mulf %36, %37 : vector<8x1xf32>
    %39 = vector.broadcast %38 : vector<8x1xf32> to vector<8x128xf32>
    %40 = arith.subf %31, %39 : vector<8x128xf32>
    %41 = vector.broadcast %38 : vector<8x1xf32> to vector<8x128xf32>
    %42 = arith.subf %31, %41 : vector<8x128xf32>
    %43 = arith.mulf %40, %42 : vector<8x128xf32>
    %cst_22 = arith.constant 0.000000e+00 : f32
    %44 = vector.broadcast %cst_22 : f32 to vector<8x128xf32>
    %45 = arith.select %34, %43, %44 : vector<8x128xi1>, vector<8x128xf32>
    %cst_23 = arith.constant dense<0.000000e+00> : vector<8xf32>
    %46 = vector.multi_reduction <add>, %45, %cst_23 [1] : vector<8x128xf32> to vector<8xf32>
    %47 = vector.shape_cast %46 : vector<8xf32> to vector<8x1xf32>
    %cst_24 = arith.constant 1.562500e-02 : f32
    %48 = vector.broadcast %cst_24 : f32 to vector<8x1xf32>
    %49 = arith.mulf %47, %48 : vector<8x1xf32>
    %50 = vector.broadcast %38 : vector<8x1xf32> to vector<8x128xf32>
    %51 = arith.subf %31, %50 : vector<8x128xf32>
    %cst_25 = arith.constant 9.99999974E-6 : f32
    %52 = vector.broadcast %cst_25 : f32 to vector<8x1xf32>
    %53 = arith.addf %49, %52 : vector<8x1xf32>
    %54 = math.rsqrt %53 : vector<8x1xf32>
    %55 = vector.broadcast %54 : vector<8x1xf32> to vector<8x128xf32>
    %56 = arith.mulf %51, %55 : vector<8x128xf32>
    %57 = vector.broadcast %24 : vector<1x128xf32> to vector<8x128xf32>
    %58 = arith.mulf %56, %57 : vector<8x128xf32>
    %59 = vector.broadcast %25 : vector<1x128xf32> to vector<8x128xf32>
    %60 = arith.addf %58, %59 : vector<8x128xf32>
    %cst_26 = arith.constant 5.000000e-01 : f32
    %61 = vector.broadcast %cst_26 : f32 to vector<8x128xf32>
    %62 = arith.mulf %61, %60 : vector<8x128xf32>
    %cst_27 = arith.constant 4.471500e-02 : f32
    %63 = vector.broadcast %cst_27 : f32 to vector<8x128xf32>
    %64 = arith.mulf %63, %60 : vector<8x128xf32>
    %65 = arith.mulf %64, %60 : vector<8x128xf32>
    %66 = arith.mulf %65, %60 : vector<8x128xf32>
    %67 = arith.addf %60, %66 : vector<8x128xf32>
    %cst_28 = arith.constant 0.797884583 : f32
    %68 = vector.broadcast %cst_28 : f32 to vector<8x128xf32>
    %69 = arith.mulf %68, %67 : vector<8x128xf32>
    %70 = math.tanh %69 : vector<8x128xf32>
    %cst_29 = arith.constant 1.000000e+00 : f32
    %71 = vector.broadcast %cst_29 : f32 to vector<8x128xf32>
    %72 = arith.addf %71, %70 : vector<8x128xf32>
    %73 = arith.mulf %62, %72 : vector<8x128xf32>
    %74 = arith.truncf %73 : vector<8x128xf32> to vector<8x128xbf16>
    %cst_30 = arith.constant dense<0.000000e+00> : vector<8x128xf32>
    %75 = tpu.matmul %74, %26, %cst_30 {dimension_numbers = #tpu.dot_dimension_numbers<[1], [0], [0], [1], [0, 0, 1, 1], [], []>} : vector<8x128xbf16>, vector<128x128xbf16>, vector<8x128xf32> -> vector<8x128xf32>
    %76 = vector.broadcast %27 : vector<1x128xf32> to vector<8x128xf32>
    %77 = arith.addf %75, %76 : vector<8x128xf32>
    %78 = arith.mulf %77, %77 : vector<8x128xf32>
    %cst_31 = arith.constant dense<0.000000e+00> : vector<8xf32>
    %79 = vector.multi_reduction <add>, %78, %cst_31 [1] : vector<8x128xf32> to vector<8xf32>
    %80 = vector.shape_cast %79 : vector<8xf32> to vector<8x1xf32>
    %81 = math.sqrt %80 : vector<8x1xf32>
    %82 = math.tanh %81 : vector<8x1xf32>
    %cst_32 = arith.constant 9.99999974E-6 : f32
    %83 = vector.broadcast %cst_32 : f32 to vector<8x1xf32>
    %84 = arith.maximumf %81, %83 : vector<8x1xf32>
    %85 = arith.divf %82, %84 : vector<8x1xf32>
    %86 = vector.broadcast %85 : vector<8x1xf32> to vector<8x128xf32>
    %87 = arith.mulf %86, %77 : vector<8x128xf32>
    %c0_33 = arith.constant 0 : index
    %c0_34 = arith.constant 0 : index
    %88 = vector.load %arg18[%c0_33, %c0_34] : memref<8x128xf32, #tpu.memory_space<vmem>>, vector<8x128xf32>
    tpu.vector_store %arg18[%c0_33, %c0_34], %87 {strides = array<i32>} : memref<8x128xf32, #tpu.memory_space<vmem>>, vector<8x128xf32>,
    %c0_35 = arith.constant 0 : index
    %c0_36 = arith.constant 0 : index
    %89 = vector.load %arg8[%c0_35, %c0_36] : memref<128x128xbf16, #tpu.memory_space<vmem>>, vector<128x128xbf16>
    %c0_37 = arith.constant 0 : index
    %c0_38 = arith.constant 0 : index
    %90 = vector.load %arg9[%c0_37, %c0_38] : memref<1x128xf32, #tpu.memory_space<vmem>>, vector<1x128xf32>
    %c0_39 = arith.constant 0 : index
    %c0_40 = arith.constant 0 : index
    %91 = vector.load %arg10[%c0_39, %c0_40] : memref<1x128xf32, #tpu.memory_space<vmem>>, vector<1x128xf32>
    %92 = arith.mulf %87, %87 : vector<8x128xf32>
    %cst_41 = arith.constant dense<0.000000e+00> : vector<8xf32>
    %93 = vector.multi_reduction <add>, %92, %cst_41 [1] : vector<8x128xf32> to vector<8xf32>
    %94 = vector.shape_cast %93 : vector<8xf32> to vector<8x1xf32>
    %95 = arith.truncf %87 : vector<8x128xf32> to vector<8x128xbf16>
    %cst_42 = arith.constant dense<0.000000e+00> : vector<8x128xf32>
    %96 = tpu.matmul %95, %89, %cst_42 {dimension_numbers = #tpu.dot_dimension_numbers<[1], [1], [0], [0], [0, 0, 1, 0], [], []>} : vector<8x128xbf16>, vector<128x128xbf16>, vector<8x128xf32> -> vector<8x128xf32>
    %97 = vector.broadcast %94 : vector<8x1xf32> to vector<8x128xf32>
    %98 = vector.broadcast %90 : vector<1x128xf32> to vector<8x128xf32>
    %99 = arith.addf %97, %98 : vector<8x128xf32>
    %cst_43 = arith.constant 2.000000e+00 : f32
    %100 = vector.broadcast %cst_43 : f32 to vector<8x128xf32>
    %101 = arith.mulf %100, %96 : vector<8x128xf32>
    %102 = arith.subf %99, %101 : vector<8x128xf32>
    %cst_44 = arith.constant 0.000000e+00 : f32
    %103 = vector.broadcast %cst_44 : f32 to vector<8x128xf32>
    %104 = arith.maximumf %102, %103 : vector<8x128xf32>
    %cst_45 = arith.constant 1.000000e+00 : f32
    %105 = vector.broadcast %cst_45 : f32 to vector<8x1xf32>
    %106 = arith.subf %105, %94 : vector<8x1xf32>
    %cst_46 = arith.constant 1.000000e+00 : f32
    %107 = vector.broadcast %cst_46 : f32 to vector<1x128xf32>
    %108 = arith.subf %107, %90 : vector<1x128xf32>
    %109 = vector.broadcast %106 : vector<8x1xf32> to vector<8x128xf32>
    %110 = vector.broadcast %108 : vector<1x128xf32> to vector<8x128xf32>
    %111 = arith.mulf %109, %110 : vector<8x128xf32>
    %cst_47 = arith.constant 9.99999974E-6 : f32
    %112 = vector.broadcast %cst_47 : f32 to vector<8x128xf32>
    %113 = arith.maximumf %111, %112 : vector<8x128xf32>
    %cst_48 = arith.constant 2.000000e+00 : f32
    %114 = vector.broadcast %cst_48 : f32 to vector<8x128xf32>
    %115 = arith.mulf %114, %104 : vector<8x128xf32>
    %116 = tpu.reciprocal %113 {approx = true} : vector<8x128xf32> -> vector<8x128xf32>
    %117 = arith.mulf %115, %116 : vector<8x128xf32>
    %cst_49 = arith.constant 1.000000e+00 : f32
    %118 = vector.broadcast %cst_49 : f32 to vector<8x128xf32>
    %119 = arith.addf %118, %117 : vector<8x128xf32>
    %cst_50 = arith.constant 1.000000e+00 : f32
    %120 = vector.broadcast %cst_50 : f32 to vector<8x128xf32>
    %121 = arith.maximumf %119, %120 : vector<8x128xf32>
    %cst_51 = arith.constant 1.000000e+00 : f32
    %122 = vector.broadcast %cst_51 : f32 to vector<8x128xf32>
    %123 = arith.subf %121, %122 : vector<8x128xf32>
    %cst_52 = arith.constant 1.000000e+00 : f32
    %124 = vector.broadcast %cst_52 : f32 to vector<8x128xf32>
    %125 = arith.addf %121, %124 : vector<8x128xf32>
    %126 = arith.mulf %123, %125 : vector<8x128xf32>
    %127 = math.sqrt %126 : vector<8x128xf32>
    %128 = arith.addf %121, %127 : vector<8x128xf32>
    %129 = math.log %128 : vector<8x128xf32>
    %130 = vector.broadcast %91 : vector<1x128xf32> to vector<8x128xf32>
    %131 = arith.mulf %129, %130 : vector<8x128xf32>
    %132 = tpu.iota {dimensions = array<i32: 1>} : vector<8x128xi32>
    %c16_i32 = arith.constant 16 : i32
    %133 = vector.broadcast %c16_i32 : i32 to vector<8x128xi32>
    %134 = arith.cmpi slt, %132, %133 : vector<8x128xi32>
    %cst_53 = arith.constant 1.000000e+30 : f32
    %135 = vector.broadcast %cst_53 : f32 to vector<8x128xf32>
    %136 = arith.select %134, %131, %135 : vector<8x128xi1>, vector<8x128xf32>
    %cst_54 = arith.constant 0.000000e+00 : f32
    %137 = vector.broadcast %cst_54 : f32 to vector<8x128xf32>
    %c0_i32 = arith.constant 0 : i32
    %c4_i32 = arith.constant 4 : i32
    %138 = arith.addi %c0_i32, %c4_i32 : i32
    %c1_i32 = arith.constant 1 : i32
    %139:2 = scf.for %arg19 = %c0_i32 to %138 step %c1_i32 iter_args(%arg20 = %136, %arg21 = %137) -> (vector<8x128xf32>, vector<8x128xf32>)  : i32 {
      %cst_92 = arith.constant dense<0x7F800000> : vector<8xf32>
      %230 = vector.multi_reduction <minimumf>, %arg20, %cst_92 [1] : vector<8x128xf32> to vector<8xf32>
      %231 = vector.shape_cast %230 : vector<8xf32> to vector<8x1xf32>
      %232 = vector.broadcast %231 : vector<8x1xf32> to vector<8x128xf32>
      %233 = arith.cmpf oeq, %arg20, %232 : vector<8x128xf32>
      %c128_i32 = arith.constant 128 : i32
      %234 = vector.broadcast %c128_i32 : i32 to vector<8x128xi32>
      %235 = arith.select %233, %132, %234 : vector<8x128xi1>, vector<8x128xi32>
      %cst_93 = arith.constant dense<2147483647> : vector<8xi32>
      %236 = vector.multi_reduction <minsi>, %235, %cst_93 [1] : vector<8x128xi32> to vector<8xi32>
      %237 = vector.shape_cast %236 : vector<8xi32> to vector<8x1xi32>
      %238 = vector.broadcast %237 : vector<8x1xi32> to vector<8x128xi32>
      %239 = arith.cmpi eq, %132, %238 : vector<8x128xi32>
      %cst_94 = arith.constant 0.000000e+00 : f32
      %240 = vector.broadcast %cst_94 : f32 to vector<8x1xf32>
      %241 = arith.subf %240, %231 : vector<8x1xf32>
      %242 = math.exp %241 : vector<8x1xf32>
      %cst_95 = arith.constant 0.000000e+00 : f32
      %243 = vector.shape_cast %242 : vector<8x1xf32> to vector<8x1xf32>
      %244 = vector.broadcast %243 : vector<8x1xf32> to vector<8x128xf32>
      %245 = vector.broadcast %cst_95 : f32 to vector<8x128xf32>
      %246 = arith.select %239, %244, %245 : vector<8x128xi1>, vector<8x128xf32>
      %247 = arith.addf %arg21, %246 : vector<8x128xf32>
      %cst_96 = arith.constant 1.000000e+30 : f32
      %248 = vector.broadcast %cst_96 : f32 to vector<8x128xf32>
      %249 = arith.select %239, %248, %arg20 : vector<8x128xi1>, vector<8x128xf32>
      scf.yield %249, %247 : vector<8x128xf32>, vector<8x128xf32>
    }
    %140 = arith.truncf %139#1 : vector<8x128xf32> to vector<8x128xbf16>
    %cst_55 = arith.constant dense<0.000000e+00> : vector<8x128xf32>
    %141 = tpu.matmul %140, %89, %cst_55 {dimension_numbers = #tpu.dot_dimension_numbers<[1], [0], [0], [1], [0, 0, 1, 1], [], []>} : vector<8x128xbf16>, vector<128x128xbf16>, vector<8x128xf32> -> vector<8x128xf32>
    %142 = arith.mulf %141, %141 : vector<8x128xf32>
    %cst_56 = arith.constant dense<0.000000e+00> : vector<8xf32>
    %143 = vector.multi_reduction <add>, %142, %cst_56 [1] : vector<8x128xf32> to vector<8xf32>
    %144 = vector.shape_cast %143 : vector<8xf32> to vector<8x1xf32>
    %145 = math.sqrt %144 : vector<8x1xf32>
    %cst_57 = arith.constant 0.000000e+00 : f32
    %cst_58 = arith.constant 0.999989986 : f32
    %146 = vector.broadcast %cst_57 : f32 to vector<8x1xf32>
    %147 = arith.maximumf %146, %145 : vector<8x1xf32>
    %148 = vector.broadcast %cst_58 : f32 to vector<8x1xf32>
    %149 = arith.minimumf %148, %147 : vector<8x1xf32>
    %cst_59 = arith.constant 1.000000e+00 : f32
    %150 = vector.broadcast %cst_59 : f32 to vector<8x1xf32>
    %151 = arith.addf %150, %149 : vector<8x1xf32>
    %cst_60 = arith.constant 1.000000e+00 : f32
    %152 = vector.broadcast %cst_60 : f32 to vector<8x1xf32>
    %153 = arith.subf %152, %149 : vector<8x1xf32>
    %154 = arith.divf %151, %153 : vector<8x1xf32>
    %155 = math.log %154 : vector<8x1xf32>
    %cst_61 = arith.constant 5.000000e-01 : f32
    %156 = vector.broadcast %cst_61 : f32 to vector<8x1xf32>
    %157 = arith.mulf %156, %155 : vector<8x1xf32>
    %cst_62 = arith.constant 9.99999974E-6 : f32
    %158 = vector.broadcast %cst_62 : f32 to vector<8x1xf32>
    %159 = arith.maximumf %145, %158 : vector<8x1xf32>
    %160 = arith.divf %157, %159 : vector<8x1xf32>
    %161 = vector.broadcast %160 : vector<8x1xf32> to vector<8x128xf32>
    %162 = arith.mulf %161, %141 : vector<8x128xf32>
    %c0_63 = arith.constant 0 : index
    %c0_64 = arith.constant 0 : index
    %163 = vector.load %arg11[%c0_63, %c0_64] : memref<128x128xbf16, #tpu.memory_space<vmem>>, vector<128x128xbf16>
    %c0_65 = arith.constant 0 : index
    %c0_66 = arith.constant 0 : index
    %164 = vector.load %arg12[%c0_65, %c0_66] : memref<1x128xf32, #tpu.memory_space<vmem>>, vector<1x128xf32>
    %c0_67 = arith.constant 0 : index
    %c0_68 = arith.constant 0 : index
    %165 = vector.load %arg13[%c0_67, %c0_68] : memref<1x128xf32, #tpu.memory_space<vmem>>, vector<1x128xf32>
    %c0_69 = arith.constant 0 : index
    %c0_70 = arith.constant 0 : index
    %166 = vector.load %arg14[%c0_69, %c0_70] : memref<1x128xf32, #tpu.memory_space<vmem>>, vector<1x128xf32>
    %c0_71 = arith.constant 0 : index
    %c0_72 = arith.constant 0 : index
    %167 = vector.load %arg15[%c0_71, %c0_72] : memref<128x128xbf16, #tpu.memory_space<vmem>>, vector<128x128xbf16>
    %c0_73 = arith.constant 0 : index
    %c0_74 = arith.constant 0 : index
    %168 = vector.load %arg16[%c0_73, %c0_74] : memref<1x128xf32, #tpu.memory_space<vmem>>, vector<1x128xf32>
    %169 = arith.truncf %162 : vector<8x128xf32> to vector<8x128xbf16>
    %cst_75 = arith.constant dense<0.000000e+00> : vector<8x128xf32>
    %170 = tpu.matmul %169, %163, %cst_75 {dimension_numbers = #tpu.dot_dimension_numbers<[1], [0], [0], [1], [0, 0, 1, 1], [], []>} : vector<8x128xbf16>, vector<128x128xbf16>, vector<8x128xf32> -> vector<8x128xf32>
    %171 = vector.broadcast %164 : vector<1x128xf32> to vector<8x128xf32>
    %172 = arith.addf %170, %171 : vector<8x128xf32>
    %173 = tpu.iota {dimensions = array<i32: 1>} : vector<8x128xi32>
    %c64_i32_76 = arith.constant 64 : i32
    %174 = vector.broadcast %c64_i32_76 : i32 to vector<8x128xi32>
    %175 = arith.cmpi slt, %173, %174 : vector<8x128xi32>
    %cst_77 = arith.constant dense<0.000000e+00> : vector<8xf32>
    %176 = vector.multi_reduction <add>, %172, %cst_77 [1] : vector<8x128xf32> to vector<8xf32>
    %177 = vector.shape_cast %176 : vector<8xf32> to vector<8x1xf32>
    %cst_78 = arith.constant 1.562500e-02 : f32
    %178 = vector.broadcast %cst_78 : f32 to vector<8x1xf32>
    %179 = arith.mulf %177, %178 : vector<8x1xf32>
    %180 = vector.broadcast %179 : vector<8x1xf32> to vector<8x128xf32>
    %181 = arith.subf %172, %180 : vector<8x128xf32>
    %182 = vector.broadcast %179 : vector<8x1xf32> to vector<8x128xf32>
    %183 = arith.subf %172, %182 : vector<8x128xf32>
    %184 = arith.mulf %181, %183 : vector<8x128xf32>
    %cst_79 = arith.constant 0.000000e+00 : f32
    %185 = vector.broadcast %cst_79 : f32 to vector<8x128xf32>
    %186 = arith.select %175, %184, %185 : vector<8x128xi1>, vector<8x128xf32>
    %cst_80 = arith.constant dense<0.000000e+00> : vector<8xf32>
    %187 = vector.multi_reduction <add>, %186, %cst_80 [1] : vector<8x128xf32> to vector<8xf32>
    %188 = vector.shape_cast %187 : vector<8xf32> to vector<8x1xf32>
    %cst_81 = arith.constant 1.562500e-02 : f32
    %189 = vector.broadcast %cst_81 : f32 to vector<8x1xf32>
    %190 = arith.mulf %188, %189 : vector<8x1xf32>
    %191 = vector.broadcast %179 : vector<8x1xf32> to vector<8x128xf32>
    %192 = arith.subf %172, %191 : vector<8x128xf32>
    %cst_82 = arith.constant 9.99999974E-6 : f32
    %193 = vector.broadcast %cst_82 : f32 to vector<8x1xf32>
    %194 = arith.addf %190, %193 : vector<8x1xf32>
    %195 = math.rsqrt %194 : vector<8x1xf32>
    %196 = vector.broadcast %195 : vector<8x1xf32> to vector<8x128xf32>
    %197 = arith.mulf %192, %196 : vector<8x128xf32>
    %198 = vector.broadcast %165 : vector<1x128xf32> to vector<8x128xf32>
    %199 = arith.mulf %197, %198 : vector<8x128xf32>
    %200 = vector.broadcast %166 : vector<1x128xf32> to vector<8x128xf32>
    %201 = arith.addf %199, %200 : vector<8x128xf32>
    %cst_83 = arith.constant 5.000000e-01 : f32
    %202 = vector.broadcast %cst_83 : f32 to vector<8x128xf32>
    %203 = arith.mulf %202, %201 : vector<8x128xf32>
    %cst_84 = arith.constant 4.471500e-02 : f32
    %204 = vector.broadcast %cst_84 : f32 to vector<8x128xf32>
    %205 = arith.mulf %204, %201 : vector<8x128xf32>
    %206 = arith.mulf %205, %201 : vector<8x128xf32>
    %207 = arith.mulf %206, %201 : vector<8x128xf32>
    %208 = arith.addf %201, %207 : vector<8x128xf32>
    %cst_85 = arith.constant 0.797884583 : f32
    %209 = vector.broadcast %cst_85 : f32 to vector<8x128xf32>
    %210 = arith.mulf %209, %208 : vector<8x128xf32>
    %211 = math.tanh %210 : vector<8x128xf32>
    %cst_86 = arith.constant 1.000000e+00 : f32
    %212 = vector.broadcast %cst_86 : f32 to vector<8x128xf32>
    %213 = arith.addf %212, %211 : vector<8x128xf32>
    %214 = arith.mulf %203, %213 : vector<8x128xf32>
    %215 = arith.truncf %214 : vector<8x128xf32> to vector<8x128xbf16>
    %cst_87 = arith.constant dense<0.000000e+00> : vector<8x128xf32>
    %216 = tpu.matmul %215, %167, %cst_87 {dimension_numbers = #tpu.dot_dimension_numbers<[1], [0], [0], [1], [0, 0, 1, 1], [], []>} : vector<8x128xbf16>, vector<128x128xbf16>, vector<8x128xf32> -> vector<8x128xf32>
    %217 = vector.broadcast %168 : vector<1x128xf32> to vector<8x128xf32>
    %218 = arith.addf %216, %217 : vector<8x128xf32>
    %219 = arith.mulf %218, %218 : vector<8x128xf32>
    %cst_88 = arith.constant dense<0.000000e+00> : vector<8xf32>
    %220 = vector.multi_reduction <add>, %219, %cst_88 [1] : vector<8x128xf32> to vector<8xf32>
    %221 = vector.shape_cast %220 : vector<8xf32> to vector<8x1xf32>
    %222 = math.sqrt %221 : vector<8x1xf32>
    %223 = math.tanh %222 : vector<8x1xf32>
    %cst_89 = arith.constant 9.99999974E-6 : f32
    %224 = vector.broadcast %cst_89 : f32 to vector<8x1xf32>
    %225 = arith.maximumf %222, %224 : vector<8x1xf32>
    %226 = arith.divf %223, %225 : vector<8x1xf32>
    %227 = vector.broadcast %226 : vector<8x1xf32> to vector<8x128xf32>
    %228 = arith.mulf %227, %218 : vector<8x128xf32>
    %c0_90 = arith.constant 0 : index
    %c0_91 = arith.constant 0 : index
    %229 = vector.load %arg17[%c0_90, %c0_91] : memref<8x128xf32, #tpu.memory_space<vmem>>, vector<8x128xf32>
    tpu.vector_store %arg17[%c0_90, %c0_91], %228 {strides = array<i32>} : memref<8x128xf32, #tpu.memory_space<vmem>>, vector<8x128xf32>,
    return
  }
  func.func @transform_0(%arg0: i32) -> (i32, i32) {
    %c0_i32 = arith.constant 0 : i32
    %c0_i32_0 = arith.constant 0 : i32
    return %arg0, %c0_i32 : i32, i32
  }
  func.func @transform_1(%arg0: i32) -> (i32, i32) {
    %c0_i32 = arith.constant 0 : i32
    %c0_i32_0 = arith.constant 0 : i32
    %c0_i32_1 = arith.constant 0 : i32
    return %c0_i32, %c0_i32_0 : i32, i32
  }
  func.func @transform_2(%arg0: i32) -> (i32, i32) {
    %c0_i32 = arith.constant 0 : i32
    %c0_i32_0 = arith.constant 0 : i32
    %c0_i32_1 = arith.constant 0 : i32
    return %c0_i32, %c0_i32_0 : i32, i32
  }
  func.func @transform_3(%arg0: i32) -> (i32, i32) {
    %c0_i32 = arith.constant 0 : i32
    %c0_i32_0 = arith.constant 0 : i32
    %c0_i32_1 = arith.constant 0 : i32
    return %c0_i32, %c0_i32_0 : i32, i32
  }
  func.func @transform_4(%arg0: i32) -> (i32, i32) {
    %c0_i32 = arith.constant 0 : i32
    %c0_i32_0 = arith.constant 0 : i32
    %c0_i32_1 = arith.constant 0 : i32
    return %c0_i32, %c0_i32_0 : i32, i32
  }
  func.func @transform_5(%arg0: i32) -> (i32, i32) {
    %c0_i32 = arith.constant 0 : i32
    %c0_i32_0 = arith.constant 0 : i32
    %c0_i32_1 = arith.constant 0 : i32
    return %c0_i32, %c0_i32_0 : i32, i32
  }
  func.func @transform_6(%arg0: i32) -> (i32, i32) {
    %c0_i32 = arith.constant 0 : i32
    %c0_i32_0 = arith.constant 0 : i32
    %c0_i32_1 = arith.constant 0 : i32
    return %c0_i32, %c0_i32_0 : i32, i32
  }
  func.func @transform_7(%arg0: i32) -> (i32, i32) {
    %c0_i32 = arith.constant 0 : i32
    %c0_i32_0 = arith.constant 0 : i32
    %c0_i32_1 = arith.constant 0 : i32
    return %c0_i32, %c0_i32_0 : i32, i32
  }
  func.func @transform_8(%arg0: i32) -> (i32, i32) {
    %c0_i32 = arith.constant 0 : i32
    %c0_i32_0 = arith.constant 0 : i32
    %c0_i32_1 = arith.constant 0 : i32
    return %c0_i32, %c0_i32_0 : i32, i32
  }
  func.func @transform_9(%arg0: i32) -> (i32, i32) {
    %c0_i32 = arith.constant 0 : i32
    %c0_i32_0 = arith.constant 0 : i32
    %c0_i32_1 = arith.constant 0 : i32
    return %c0_i32, %c0_i32_0 : i32, i32
  }
  func.func @transform_10(%arg0: i32) -> (i32, i32) {
    %c0_i32 = arith.constant 0 : i32
    %c0_i32_0 = arith.constant 0 : i32
    %c0_i32_1 = arith.constant 0 : i32
    return %c0_i32, %c0_i32_0 : i32, i32
  }
  func.func @transform_11(%arg0: i32) -> (i32, i32) {
    %c0_i32 = arith.constant 0 : i32
    %c0_i32_0 = arith.constant 0 : i32
    %c0_i32_1 = arith.constant 0 : i32
    return %c0_i32, %c0_i32_0 : i32, i32
  }
  func.func @transform_12(%arg0: i32) -> (i32, i32) {
    %c0_i32 = arith.constant 0 : i32
    %c0_i32_0 = arith.constant 0 : i32
    %c0_i32_1 = arith.constant 0 : i32
    return %c0_i32, %c0_i32_0 : i32, i32
  }
  func.func @transform_13(%arg0: i32) -> (i32, i32) {
    %c0_i32 = arith.constant 0 : i32
    %c0_i32_0 = arith.constant 0 : i32
    %c0_i32_1 = arith.constant 0 : i32
    return %c0_i32, %c0_i32_0 : i32, i32
  }
  func.func @transform_14(%arg0: i32) -> (i32, i32) {
    %c0_i32 = arith.constant 0 : i32
    %c0_i32_0 = arith.constant 0 : i32
    %c0_i32_1 = arith.constant 0 : i32
    return %c0_i32, %c0_i32_0 : i32, i32
  }
  func.func @transform_15(%arg0: i32) -> (i32, i32) {
    %c0_i32 = arith.constant 0 : i32
    %c0_i32_0 = arith.constant 0 : i32
    %c0_i32_1 = arith.constant 0 : i32
    return %c0_i32, %c0_i32_0 : i32, i32
  }
  func.func @transform_16(%arg0: i32) -> (i32, i32) {
    %c0_i32 = arith.constant 0 : i32
    %c0_i32_0 = arith.constant 0 : i32
    return %arg0, %c0_i32 : i32, i32
  }
  func.func @transform_17(%arg0: i32) -> (i32, i32) {
    %c0_i32 = arith.constant 0 : i32
    %c0_i32_0 = arith.constant 0 : i32
    return %arg0, %c0_i32 : i32, i32
  }
}

</mosaic_0001>

<llo_original>
// kernel: tpu_custom_call.1
$region0: #{tpu_custom_call.1}
  #allocation0 [shape = 'u32[]', space=smem, size = 0x4, offset = 0x4, fixed_abs, tag = 'smem constant byte address 0x4 - core index']
  #allocation1 [shape = 'u32[144,128]{1,0:T(1,128)}', space=vmem, size = 0x12000, scoped, tag = 'internal scratch']
  %s0 = inlined_call_operand.hbm [shape: f32[16,128], index: 0, kind: input, shape index: {}]
  %s1 = inlined_call_operand.hbm [shape: bf16[128,128], index: 1, kind: input, shape index: {}]
  %s2 = inlined_call_operand.hbm [shape: f32[1,128], index: 2, kind: input, shape index: {}]
  %s3 = inlined_call_operand.hbm [shape: f32[1,128], index: 3, kind: input, shape index: {}]
  %s4 = inlined_call_operand.hbm [shape: f32[1,128], index: 4, kind: input, shape index: {}]
  %s5 = inlined_call_operand.hbm [shape: bf16[128,128], index: 5, kind: input, shape index: {}]
  %s6 = inlined_call_operand.hbm [shape: f32[1,128], index: 6, kind: input, shape index: {}]
  %s7 = inlined_call_operand.hbm [shape: bf16[128,128], index: 7, kind: input, shape index: {}]
  %s8 = inlined_call_operand.hbm [shape: f32[1,128], index: 8, kind: input, shape index: {}]
  %s9 = inlined_call_operand.hbm [shape: f32[1,128], index: 9, kind: input, shape index: {}]
  %s10 = inlined_call_operand.hbm [shape: bf16[128,128], index: 10, kind: input, shape index: {}]
  %s11 = inlined_call_operand.hbm [shape: f32[1,128], index: 11, kind: input, shape index: {}]
  %s12 = inlined_call_operand.hbm [shape: f32[1,128], index: 12, kind: input, shape index: {}]
  %s13 = inlined_call_operand.hbm [shape: f32[1,128], index: 13, kind: input, shape index: {}]
  %s14 = inlined_call_operand.hbm [shape: bf16[128,128], index: 14, kind: input, shape index: {}]
  %s15 = inlined_call_operand.hbm [shape: f32[1,128], index: 15, kind: input, shape index: {}]
  %s16 = inlined_call_operand.hbm [shape: f32[16,128], index: 16, kind: output, shape index: {0}]
  %s17 = inlined_call_operand.hbm [shape: f32[16,128], index: 17, kind: output, shape index: {1}]
  %18 = xla_tuple %s16, %s17
  %s19 = sld [smem:[#allocation0]]
  $region176: #{tpu_custom_call.1} parent=0
    _
  %s21 = ssub.s32 1, %s19
  %s22 = scalar_select 0, %s21, %s19
  $region1: #{tpu_custom_call.1} parent=0
    #allocation2 [shape = 'u8[8192]{0}', space=vmem, size = 0x2000, scoped, tag = 'input window, operand 0']
    #allocation3 [shape = 's32[2]{0}', space=sflag, size = 0x8, scoped, tag = 'scoped memory for tpu_custom_call.1']
    #allocation4 [shape = 's32[2]{0}', space=sflag, size = 0x8, scoped, tag = 'scoped memory for tpu_custom_call.1']
    #allocation5 [shape = 'u8[32768]{0}', space=vmem, size = 0x8000, scoped, tag = 'input window, operand 1, single buffered']
    #allocation6 [shape = 's32[1]{0}', space=sflag, size = 0x4, scoped, tag = 'scoped memory for tpu_custom_call.1']
    #allocation7 [shape = 'u8[512]{0}', space=vmem, size = 0x400, scoped, tag = 'input window, operand 2, single buffered']
    #allocation8 [shape = 'u8[512]{0}', space=vmem, size = 0x400, scoped, tag = 'input window, operand 3, single buffered']
    #allocation9 [shape = 's32[1]{0}', space=sflag, size = 0x4, scoped, tag = 'scoped memory for tpu_custom_call.1']
    #allocation10 [shape = 'u8[512]{0}', space=vmem, size = 0x400, scoped, tag = 'input window, operand 4, single buffered']
    #allocation11 [shape = 'u8[32768]{0}', space=vmem, size = 0x8000, scoped, tag = 'input window, operand 5, single buffered']
    #allocation12 [shape = 's32[1]{0}', space=sflag, size = 0x4, scoped, tag = 'scoped memory for tpu_custom_call.1']
    #allocation13 [shape = 'u8[512]{0}', space=vmem, size = 0x400, scoped, tag = 'input window, operand 6, single buffered']
    #allocation14 [shape = 'u8[32768]{0}', space=vmem, size = 0x8000, scoped, tag = 'input window, operand 7, single buffered']
    #allocation15 [shape = 's32[1]{0}', space=sflag, size = 0x4, scoped, tag = 'scoped memory for tpu_custom_call.1']
    #allocation16 [shape = 'u8[512]{0}', space=vmem, size = 0x400, scoped, tag = 'input window, operand 8, single buffered']
    #allocation17 [shape = 'u8[512]{0}', space=vmem, size = 0x400, scoped, tag = 'input window, operand 9, single buffered']
    #allocation18 [shape = 's32[1]{0}', space=sflag, size = 0x4, scoped, tag = 'scoped memory for tpu_custom_call.1']
    #allocation19 [shape = 'u8[32768]{0}', space=vmem, size = 0x8000, scoped, tag = 'input window, operand 10, single buffered']
    #allocation20 [shape = 'u8[512]{0}', space=vmem, size = 0x400, scoped, tag = 'input window, operand 11, single buffered']
    #allocation21 [shape = 's32[1]{0}', space=sflag, size = 0x4, scoped, tag = 'scoped memory for tpu_custom_call.1']
    #allocation22 [shape = 'u8[512]{0}', space=vmem, size = 0x400, scoped, tag = 'input window, operand 12, single buffered']
    #allocation23 [shape = 'u8[512]{0}', space=vmem, size = 0x400, scoped, tag = 'input window, operand 13, single buffered']
    #allocation24 [shape = 's32[1]{0}', space=sflag, size = 0x4, scoped, tag = 'scoped memory for tpu_custom_call.1']
    #allocation25 [shape = 'u8[32768]{0}', space=vmem, size = 0x8000, scoped, tag = 'input window, operand 14, single buffered']
    #allocation26 [shape = 'u8[512]{0}', space=vmem, size = 0x400, scoped, tag = 'input window, operand 15, single buffered']
    #allocation27 [shape = 's32[1]{0}', space=sflag, size = 0x4, scoped, tag = 'scoped memory for tpu_custom_call.1']
    #allocation28 [shape = 'u8[8192]{0}', space=vmem, size = 0x2000, scoped, tag = 'output window, operand 0']
    #allocation29 [shape = 'u8[8192]{0}', space=vmem, size = 0x2000, scoped, tag = 'output window, operand 1']
    #allocation30 [shape = 's32[2]{0}', space=sflag, size = 0x8, scoped, tag = 'scoped memory for tpu_custom_call.1']
    %23 = vsyncpa [#allocation3], 0
    %s24 = scalar_lea.sflag [#allocation3], 1
    %25 = vsyncpa %s24, 0
    %26 = vsyncpa [#allocation6], 0
    %27 = vsyncpa [#allocation9], 0
    %28 = vsyncpa [#allocation12], 0
    %29 = vsyncpa [#allocation15], 0
    %30 = vsyncpa [#allocation18], 0
    %31 = vsyncpa [#allocation21], 0
    %32 = vsyncpa [#allocation24], 0
    %33 = vsyncpa [#allocation27], 0
    %34 = vsyncpa [#allocation4], 0
    %s35 = scalar_lea.sflag [#allocation4], 1
    %36 = vsyncpa %s35, 0
    %37 = vsyncpa [#allocation30], 0
    %s38 = scalar_lea.sflag [#allocation30], 1
    %39 = vsyncpa %s38, 0
    loop: start=0, step=1, limit=4
    $region2: #{tpu_custom_call.1} parent=1 // loop_pre_header
      _
    $region3: #{tpu_custom_call.1} parent=1 // loop_header
      %s41 = sphi 0, %s45
      %p42 = scmp.ge.s32.totalorder %s41, 4
      %s51 = sphi 0, %s53
      %s54 = sphi 0, %s51
      %s55 = sphi 0, %s54
      %s71 = sphi 0, %s55
      %s75 = sphi 0, %s75
      %s77 = sphi 0, %s75
      %s78 = sphi 0, %s77
      %s92 = sphi 0, %s78
      %s96 = sphi 0, %s96
      %s98 = sphi 0, %s96
      %s99 = sphi 0, %s98
      %s113 = sphi 0, %s99
      %s117 = sphi 0, %s117
      %s119 = sphi 0, %s117
      %s120 = sphi 0, %s119
      %s134 = sphi 0, %s120
      %s138 = sphi 0, %s138
      %s140 = sphi 0, %s138
      %s141 = sphi 0, %s140
      %s155 = sphi 0, %s141
      %s159 = sphi 0, %s159
      %s161 = sphi 0, %s159
      %s162 = sphi 0, %s161
      %s176 = sphi 0, %s162
      %s180 = sphi 0, %s180
      %s182 = sphi 0, %s180
      %s183 = sphi 0, %s182
      %s197 = sphi 0, %s183
      %s201 = sphi 0, %s201
      %s203 = sphi 0, %s201
      %s204 = sphi 0, %s203
      %s218 = sphi 0, %s204
      %s222 = sphi 0, %s222
      %s224 = sphi 0, %s222
      %s225 = sphi 0, %s224
      %s239 = sphi 0, %s225
      %s243 = sphi 0, %s243
      %s245 = sphi 0, %s243
      %s246 = sphi 0, %s245
      %s260 = sphi 0, %s246
      %s264 = sphi 0, %s264
      %s266 = sphi 0, %s264
      %s267 = sphi 0, %s266
      %s281 = sphi 0, %s267
      %s285 = sphi 0, %s285
      %s287 = sphi 0, %s285
      %s288 = sphi 0, %s287
      %s302 = sphi 0, %s288
      %s306 = sphi 0, %s306
      %s308 = sphi 0, %s306
      %s309 = sphi 0, %s308
      %s323 = sphi 0, %s309
      %s327 = sphi 0, %s327
      %s329 = sphi 0, %s327
      %s330 = sphi 0, %s329
      %s344 = sphi 0, %s330
      %s348 = sphi 0, %s348
      %s350 = sphi 0, %s348
      %s351 = sphi 0, %s350
      %s365 = sphi 0, %s351
      %s369 = sphi 0, %s369
      %s371 = sphi 0, %s369
      %s372 = sphi 0, %s371
      %s386 = sphi 0, %s372
      %s392 = sphi 0, %s394
      %s395 = sphi 0, %s392
      %s396 = sphi 0, %s395
      %s412 = sphi 0, %s396
      %s418 = sphi 0, %s420
      %s421 = sphi 0, %s418
      %s422 = sphi 0, %s421
      %s438 = sphi 0, %s422
    $region4: #{tpu_custom_call.1} parent=1 // loop_header_branch
      %44 = sbr.rel (%p42) target = $region8
    $region5: #{tpu_custom_call.1} parent=1 // loop_body
      %s46 = ssub.s32 %s41, 1
      %s47 = ssub.s32 %s41, 2
      %s48 = sadd.s32 %s41, 1
      %s49 = ssub.s32 %s41, %s48
      %p50 = scmp.eq.s32.totalorder %s49, 0
      %s52 = sadd.s32 %s51, 1
      %s53 = scalar_select %p50, %s51, %s52
      %p56 = pneg %p50
      %p57 = scmp.eq.s32.totalorder %s41, 1
      %p58 = por %p56, %p57
      %p59 = scmp.ne.s32.totalorder %s51, %s54
      %p60 = scmp.eq.s32.totalorder %s41, 0
      %p61 = por %p59, %p60
      %p62 = scmp.ne.s32.totalorder %s51, %s54
      %p63 = scmp.eq.s32.totalorder %s46, 1
      %p64 = por %p62, %p63
      %p65 = scmp.ne.s32.totalorder %s54, %s55
      %p66 = scmp.eq.s32.totalorder %s46, 0
      %p67 = por %p65, %p66
      %p68 = scmp.ne.s32.totalorder %s54, %s55
      %p69 = scmp.eq.s32.totalorder %s47, 1
      %p70 = por %p68, %p69
      %p72 = scmp.ne.s32.totalorder %s55, %s71
      %p73 = scmp.eq.s32.totalorder %s47, 0
      %p74 = por %p72, %p73
      %s76 = sadd.s32 %s75, 1
      %p79 = scmp.eq.s32.totalorder %s41, 1
      %p80 = scmp.ne.s32.totalorder %s75, %s77
      %p81 = scmp.eq.s32.totalorder %s41, 0
      %p82 = por %p80, %p81
      %p83 = scmp.ne.s32.totalorder %s75, %s77
      %p84 = scmp.eq.s32.totalorder %s46, 1
      %p85 = por %p83, %p84
      %p86 = scmp.ne.s32.totalorder %s77, %s78
      %p87 = scmp.eq.s32.totalorder %s46, 0
      %p88 = por %p86, %p87
      %p89 = scmp.ne.s32.totalorder %s77, %s78
      %p90 = scmp.eq.s32.totalorder %s47, 1
      %p91 = por %p89, %p90
      %p93 = scmp.ne.s32.totalorder %s78, %s92
      %p94 = scmp.eq.s32.totalorder %s47, 0
      %p95 = por %p93, %p94
      %s97 = sadd.s32 %s96, 1
      %p100 = scmp.eq.s32.totalorder %s41, 1
      %p101 = scmp.ne.s32.totalorder %s96, %s98
      %p102 = scmp.eq.s32.totalorder %s41, 0
      %p103 = por %p101, %p102
      %p104 = scmp.ne.s32.totalorder %s96, %s98
      %p105 = scmp.eq.s32.totalorder %s46, 1
      %p106 = por %p104, %p105
      %p107 = scmp.ne.s32.totalorder %s98, %s99
      %p108 = scmp.eq.s32.totalorder %s46, 0
      %p109 = por %p107, %p108
      %p110 = scmp.ne.s32.totalorder %s98, %s99
      %p111 = scmp.eq.s32.totalorder %s47, 1
      %p112 = por %p110, %p111
      %p114 = scmp.ne.s32.totalorder %s99, %s113
      %p115 = scmp.eq.s32.totalorder %s47, 0
      %p116 = por %p114, %p115
      %s118 = sadd.s32 %s117, 1
      %p121 = scmp.eq.s32.totalorder %s41, 1
      %p122 = scmp.ne.s32.totalorder %s117, %s119
      %p123 = scmp.eq.s32.totalorder %s41, 0
      %p124 = por %p122, %p123
      %p125 = scmp.ne.s32.totalorder %s117, %s119
      %p126 = scmp.eq.s32.totalorder %s46, 1
      %p127 = por %p125, %p126
      %p128 = scmp.ne.s32.totalorder %s119, %s120
      %p129 = scmp.eq.s32.totalorder %s46, 0
      %p130 = por %p128, %p129
      %p131 = scmp.ne.s32.totalorder %s119, %s120
      %p132 = scmp.eq.s32.totalorder %s47, 1
      %p133 = por %p131, %p132
      %p135 = scmp.ne.s32.totalorder %s120, %s134
      %p136 = scmp.eq.s32.totalorder %s47, 0
      %p137 = por %p135, %p136
      %s139 = sadd.s32 %s138, 1
      %p142 = scmp.eq.s32.totalorder %s41, 1
      %p143 = scmp.ne.s32.totalorder %s138, %s140
      %p144 = scmp.eq.s32.totalorder %s41, 0
      %p145 = por %p143, %p144
      %p146 = scmp.ne.s32.totalorder %s138, %s140
      %p147 = scmp.eq.s32.totalorder %s46, 1
      %p148 = por %p146, %p147
      %p149 = scmp.ne.s32.totalorder %s140, %s141
      %p150 = scmp.eq.s32.totalorder %s46, 0
      %p151 = por %p149, %p150
      %p152 = scmp.ne.s32.totalorder %s140, %s141
      %p153 = scmp.eq.s32.totalorder %s47, 1
      %p154 = por %p152, %p153
      %p156 = scmp.ne.s32.totalorder %s141, %s155
      %p157 = scmp.eq.s32.totalorder %s47, 0
      %p158 = por %p156, %p157
      %s160 = sadd.s32 %s159, 1
      %p163 = scmp.eq.s32.totalorder %s41, 1
      %p164 = scmp.ne.s32.totalorder %s159, %s161
      %p165 = scmp.eq.s32.totalorder %s41, 0
      %p166 = por %p164, %p165
      %p167 = scmp.ne.s32.totalorder %s159, %s161
      %p168 = scmp.eq.s32.totalorder %s46, 1
      %p169 = por %p167, %p168
      %p170 = scmp.ne.s32.totalorder %s161, %s162
      %p171 = scmp.eq.s32.totalorder %s46, 0
      %p172 = por %p170, %p171
      %p173 = scmp.ne.s32.totalorder %s161, %s162
      %p174 = scmp.eq.s32.totalorder %s47, 1
      %p175 = por %p173, %p174
      %p177 = scmp.ne.s32.totalorder %s162, %s176
      %p178 = scmp.eq.s32.totalorder %s47, 0
      %p179 = por %p177, %p178
      %s181 = sadd.s32 %s180, 1
      %p184 = scmp.eq.s32.totalorder %s41, 1
      %p185 = scmp.ne.s32.totalorder %s180, %s182
      %p186 = scmp.eq.s32.totalorder %s41, 0
      %p187 = por %p185, %p186
      %p188 = scmp.ne.s32.totalorder %s180, %s182
      %p189 = scmp.eq.s32.totalorder %s46, 1
      %p190 = por %p188, %p189
      %p191 = scmp.ne.s32.totalorder %s182, %s183
      %p192 = scmp.eq.s32.totalorder %s46, 0
      %p193 = por %p191, %p192
      %p194 = scmp.ne.s32.totalorder %s182, %s183
      %p195 = scmp.eq.s32.totalorder %s47, 1
      %p196 = por %p194, %p195
      %p198 = scmp.ne.s32.totalorder %s183, %s197
      %p199 = scmp.eq.s32.totalorder %s47, 0
      %p200 = por %p198, %p199
      %s202 = sadd.s32 %s201, 1
      %p205 = scmp.eq.s32.totalorder %s41, 1
      %p206 = scmp.ne.s32.totalorder %s201, %s203
      %p207 = scmp.eq.s32.totalorder %s41, 0
      %p208 = por %p206, %p207
      %p209 = scmp.ne.s32.totalorder %s201, %s203
      %p210 = scmp.eq.s32.totalorder %s46, 1
      %p211 = por %p209, %p210
      %p212 = scmp.ne.s32.totalorder %s203, %s204
      %p213 = scmp.eq.s32.totalorder %s46, 0
      %p214 = por %p212, %p213
      %p215 = scmp.ne.s32.totalorder %s203, %s204
      %p216 = scmp.eq.s32.totalorder %s47, 1
      %p217 = por %p215, %p216
      %p219 = scmp.ne.s32.totalorder %s204, %s218
      %p220 = scmp.eq.s32.totalorder %s47, 0
      %p221 = por %p219, %p220
      %s223 = sadd.s32 %s222, 1
      %p226 = scmp.eq.s32.totalorder %s41, 1
      %p227 = scmp.ne.s32.totalorder %s222, %s224
      %p228 = scmp.eq.s32.totalorder %s41, 0
      %p229 = por %p227, %p228
      %p230 = scmp.ne.s32.totalorder %s222, %s224
      %p231 = scmp.eq.s32.totalorder %s46, 1
      %p232 = por %p230, %p231
      %p233 = scmp.ne.s32.totalorder %s224, %s225
      %p234 = scmp.eq.s32.totalorder %s46, 0
      %p235 = por %p233, %p234
      %p236 = scmp.ne.s32.totalorder %s224, %s225
      %p237 = scmp.eq.s32.totalorder %s47, 1
      %p238 = por %p236, %p237
      %p240 = scmp.ne.s32.totalorder %s225, %s239
      %p241 = scmp.eq.s32.totalorder %s47, 0
      %p242 = por %p240, %p241
      %s244 = sadd.s32 %s243, 1
      %p247 = scmp.eq.s32.totalorder %s41, 1
      %p248 = scmp.ne.s32.totalorder %s243, %s245
      %p249 = scmp.eq.s32.totalorder %s41, 0
      %p250 = por %p248, %p249
      %p251 = scmp.ne.s32.totalorder %s243, %s245
      %p252 = scmp.eq.s32.totalorder %s46, 1
      %p253 = por %p251, %p252
      %p254 = scmp.ne.s32.totalorder %s245, %s246
      %p255 = scmp.eq.s32.totalorder %s46, 0
      %p256 = por %p254, %p255
      %p257 = scmp.ne.s32.totalorder %s245, %s246
      %p258 = scmp.eq.s32.totalorder %s47, 1
      %p259 = por %p257, %p258
      %p261 = scmp.ne.s32.totalorder %s246, %s260
      %p262 = scmp.eq.s32.totalorder %s47, 0
      %p263 = por %p261, %p262
      %s265 = sadd.s32 %s264, 1
      %p268 = scmp.eq.s32.totalorder %s41, 1
      %p269 = scmp.ne.s32.totalorder %s264, %s266
      %p270 = scmp.eq.s32.totalorder %s41, 0
      %p271 = por %p269, %p270
      %p272 = scmp.ne.s32.totalorder %s264, %s266
      %p273 = scmp.eq.s32.totalorder %s46, 1
      %p274 = por %p272, %p273
      %p275 = scmp.ne.s32.totalorder %s266, %s267
      %p276 = scmp.eq.s32.totalorder %s46, 0
      %p277 = por %p275, %p276
      %p278 = scmp.ne.s32.totalorder %s266, %s267
      %p279 = scmp.eq.s32.totalorder %s47, 1
      %p280 = por %p278, %p279
      %p282 = scmp.ne.s32.totalorder %s267, %s281
      %p283 = scmp.eq.s32.totalorder %s47, 0
      %p284 = por %p282, %p283
      %s286 = sadd.s32 %s285, 1
      %p289 = scmp.eq.s32.totalorder %s41, 1
      %p290 = scmp.ne.s32.totalorder %s285, %s287
      %p291 = scmp.eq.s32.totalorder %s41, 0
      %p292 = por %p290, %p291
      %p293 = scmp.ne.s32.totalorder %s285, %s287
      %p294 = scmp.eq.s32.totalorder %s46, 1
      %p295 = por %p293, %p294
      %p296 = scmp.ne.s32.totalorder %s287, %s288
      %p297 = scmp.eq.s32.totalorder %s46, 0
      %p298 = por %p296, %p297
      %p299 = scmp.ne.s32.totalorder %s287, %s288
      %p300 = scmp.eq.s32.totalorder %s47, 1
      %p301 = por %p299, %p300
      %p303 = scmp.ne.s32.totalorder %s288, %s302
      %p304 = scmp.eq.s32.totalorder %s47, 0
      %p305 = por %p303, %p304
      %s307 = sadd.s32 %s306, 1
      %p310 = scmp.eq.s32.totalorder %s41, 1
      %p311 = scmp.ne.s32.totalorder %s306, %s308
      %p312 = scmp.eq.s32.totalorder %s41, 0
      %p313 = por %p311, %p312
      %p314 = scmp.ne.s32.totalorder %s306, %s308
      %p315 = scmp.eq.s32.totalorder %s46, 1
      %p316 = por %p314, %p315
      %p317 = scmp.ne.s32.totalorder %s308, %s309
      %p318 = scmp.eq.s32.totalorder %s46, 0
      %p319 = por %p317, %p318
      %p320 = scmp.ne.s32.totalorder %s308, %s309
      %p321 = scmp.eq.s32.totalorder %s47, 1
      %p322 = por %p320, %p321
      %p324 = scmp.ne.s32.totalorder %s309, %s323
      %p325 = scmp.eq.s32.totalorder %s47, 0
      %p326 = por %p324, %p325
      %s328 = sadd.s32 %s327, 1
      %p331 = scmp.eq.s32.totalorder %s41, 1
      %p332 = scmp.ne.s32.totalorder %s327, %s329
      %p333 = scmp.eq.s32.totalorder %s41, 0
      %p334 = por %p332, %p333
      %p335 = scmp.ne.s32.totalorder %s327, %s329
      %p336 = scmp.eq.s32.totalorder %s46, 1
      %p337 = por %p335, %p336
      %p338 = scmp.ne.s32.totalorder %s329, %s330
      %p339 = scmp.eq.s32.totalorder %s46, 0
      %p340 = por %p338, %p339
      %p341 = scmp.ne.s32.totalorder %s329, %s330
      %p342 = scmp.eq.s32.totalorder %s47, 1
      %p343 = por %p341, %p342
      %p345 = scmp.ne.s32.totalorder %s330, %s344
      %p346 = scmp.eq.s32.totalorder %s47, 0
      %p347 = por %p345, %p346
      %s349 = sadd.s32 %s348, 1
      %p352 = scmp.eq.s32.totalorder %s41, 1
      %p353 = scmp.ne.s32.totalorder %s348, %s350
      %p354 = scmp.eq.s32.totalorder %s41, 0
      %p355 = por %p353, %p354
      %p356 = scmp.ne.s32.totalorder %s348, %s350
      %p357 = scmp.eq.s32.totalorder %s46, 1
      %p358 = por %p356, %p357
      %p359 = scmp.ne.s32.totalorder %s350, %s351
      %p360 = scmp.eq.s32.totalorder %s46, 0
      %p361 = por %p359, %p360
      %p362 = scmp.ne.s32.totalorder %s350, %s351
      %p363 = scmp.eq.s32.totalorder %s47, 1
      %p364 = por %p362, %p363
      %p366 = scmp.ne.s32.totalorder %s351, %s365
      %p367 = scmp.eq.s32.totalorder %s47, 0
      %p368 = por %p366, %p367
      %s370 = sadd.s32 %s369, 1
      %p373 = scmp.eq.s32.totalorder %s41, 1
      %p374 = scmp.ne.s32.totalorder %s369, %s371
      %p375 = scmp.eq.s32.totalorder %s41, 0
      %p376 = por %p374, %p375
      %p377 = scmp.ne.s32.totalorder %s369, %s371
      %p378 = scmp.eq.s32.totalorder %s46, 1
      %p379 = por %p377, %p378
      %p380 = scmp.ne.s32.totalorder %s371, %s372
      %p381 = scmp.eq.s32.totalorder %s46, 0
      %p382 = por %p380, %p381
      %p383 = scmp.ne.s32.totalorder %s371, %s372
      %p384 = scmp.eq.s32.totalorder %s47, 1
      %p385 = por %p383, %p384
      %p387 = scmp.ne.s32.totalorder %s372, %s386
      %p388 = scmp.eq.s32.totalorder %s47, 0
      %p389 = por %p387, %p388
      %s390 = ssub.s32 %s41, %s48
      %p391 = scmp.eq.s32.totalorder %s390, 0
      %s393 = sadd.s32 %s392, 1
      %s394 = scalar_select %p391, %s392, %s393
      %p397 = pneg %p391
      %p398 = scmp.eq.s32.totalorder %s41, 1
      %p399 = por %p397, %p398
      %p400 = scmp.ne.s32.totalorder %s392, %s395
      %p401 = scmp.eq.s32.totalorder %s41, 0
      %p402 = por %p400, %p401
      %p403 = scmp.ne.s32.totalorder %s392, %s395
      %p404 = scmp.eq.s32.totalorder %s46, 1
      %p405 = por %p403, %p404
      %p406 = scmp.ne.s32.totalorder %s395, %s396
      %p407 = scmp.eq.s32.totalorder %s46, 0
      %p408 = por %p406, %p407
      %p409 = scmp.ne.s32.totalorder %s395, %s396
      %p410 = scmp.eq.s32.totalorder %s47, 1
      %p411 = por %p409, %p410
      %p413 = scmp.ne.s32.totalorder %s396, %s412
      %p414 = scmp.eq.s32.totalorder %s47, 0
      %p415 = por %p413, %p414
      %s416 = ssub.s32 %s41, %s48
      %p417 = scmp.eq.s32.totalorder %s416, 0
      %s419 = sadd.s32 %s418, 1
      %s420 = scalar_select %p417, %s418, %s419
      %p423 = pneg %p417
      %p424 = scmp.eq.s32.totalorder %s41, 1
      %p425 = por %p423, %p424
      %p426 = scmp.ne.s32.totalorder %s418, %s421
      %p427 = scmp.eq.s32.totalorder %s41, 0
      %p428 = por %p426, %p427
      %p429 = scmp.ne.s32.totalorder %s418, %s421
      %p430 = scmp.eq.s32.totalorder %s46, 1
      %p431 = por %p429, %p430
      %p432 = scmp.ne.s32.totalorder %s421, %s422
      %p433 = scmp.eq.s32.totalorder %s46, 0
      %p434 = por %p432, %p433
      %p435 = scmp.ne.s32.totalorder %s421, %s422
      %p436 = scmp.eq.s32.totalorder %s47, 1
      %p437 = por %p435, %p436
      %p439 = scmp.ne.s32.totalorder %s422, %s438
      %p440 = scmp.eq.s32.totalorder %s47, 0
      %p441 = por %p439, %p440
      %p442 = scmp.le.s32.totalorder 1, %s41
      %p443 = scmp.lt.s32.totalorder %s41, 3
      %p444 = pnand %p442, %p443
      %p445 = pneg %p444
      // Predicated region
      $region9: #{tpu_custom_call.1} parent=5 // pred_check
        _
      $region10: #{tpu_custom_call.1} parent=5 // pred_check_branch
        %447 = sbr.rel (%p444) target = $region12
      $region11: #{tpu_custom_call.1} parent=5 // pred_region
        %s448 = ssub.s32 %s41, 1
        // Predicated region
        $region13: #{tpu_custom_call.1} parent=11 // pred_check
          %p449 = pneg %p88
        $region14: #{tpu_custom_call.1} parent=11 // pred_check_branch
          %451 = sbr.rel (%p449) target = $region16
        $region15: #{tpu_custom_call.1} parent=11 // pred_region
          %s453 = ssub.s32 1024, 1024
          %454 = vsyncadd [#allocation6], %s453
          %s455 = sshll.u32 [#allocation5], 4
          %s456 = int_to_ptr.vmem [resolvable:$true] %s455
          %461 = dma.hbm_to_vmem [thread:$0]  %s1, 1024, %s456, [#allocation6], 64, 64, 4
        $region16: #{tpu_custom_call.1} parent=11 // pred_fallthru
          _
        // Predicated region
        $region17: #{tpu_custom_call.1} parent=11 // pred_check
          %p462 = pneg %p109
        $region18: #{tpu_custom_call.1} parent=11 // pred_check_branch
          %464 = sbr.rel (%p462) target = $region20
        $region19: #{tpu_custom_call.1} parent=11 // pred_region
          %s466 = ssub.s32 16, 16
          %467 = vsyncadd [#allocation6], %s466
          %s469 = sshll.u32 [#allocation7], 4
          %s470 = int_to_ptr.vmem [resolvable:$true] %s469
          %472 = dma.hbm_to_vmem [thread:$0]  %s2, 16, %s470, [#allocation6]
        $region20: #{tpu_custom_call.1} parent=11 // pred_fallthru
          _
        // Predicated region
        $region21: #{tpu_custom_call.1} parent=11 // pred_check
          %p473 = pneg %p130
        $region22: #{tpu_custom_call.1} parent=11 // pred_check_branch
          %475 = sbr.rel (%p473) target = $region24
        $region23: #{tpu_custom_call.1} parent=11 // pred_region
          %s477 = ssub.s32 16, 16
          %478 = vsyncadd [#allocation9], %s477
          %s480 = sshll.u32 [#allocation8], 4
          %s481 = int_to_ptr.vmem [resolvable:$true] %s480
          %483 = dma.hbm_to_vmem [thread:$0]  %s3, 16, %s481, [#allocation9]
        $region24: #{tpu_custom_call.1} parent=11 // pred_fallthru
          _
        // Predicated region
        $region25: #{tpu_custom_call.1} parent=11 // pred_check
          %p484 = pneg %p151
        $region26: #{tpu_custom_call.1} parent=11 // pred_check_branch
          %486 = sbr.rel (%p484) target = $region28
        $region27: #{tpu_custom_call.1} parent=11 // pred_region
          %s488 = ssub.s32 16, 16
          %489 = vsyncadd [#allocation9], %s488
          %s491 = sshll.u32 [#allocation10], 4
          %s492 = int_to_ptr.vmem [resolvable:$true] %s491
          %494 = dma.hbm_to_vmem [thread:$0]  %s4, 16, %s492, [#allocation9]
        $region28: #{tpu_custom_call.1} parent=11 // pred_fallthru
          _
        // Predicated region
        $region29: #{tpu_custom_call.1} parent=11 // pred_check
          %p495 = pneg %p172
        $region30: #{tpu_custom_call.1} parent=11 // pred_check_branch
          %497 = sbr.rel (%p495) target = $region32
        $region31: #{tpu_custom_call.1} parent=11 // pred_region
          %s499 = ssub.s32 1024, 1024
          %500 = vsyncadd [#allocation12], %s499
          %s501 = sshll.u32 [#allocation11], 4
          %s502 = int_to_ptr.vmem [resolvable:$true] %s501
          %507 = dma.hbm_to_vmem [thread:$0]  %s5, 1024, %s502, [#allocation12], 64, 64, 4
        $region32: #{tpu_custom_call.1} parent=11 // pred_fallthru
          _
        // Predicated region
        $region33: #{tpu_custom_call.1} parent=11 // pred_check
          %p508 = pneg %p193
        $region34: #{tpu_custom_call.1} parent=11 // pred_check_branch
          %510 = sbr.rel (%p508) target = $region36
        $region35: #{tpu_custom_call.1} parent=11 // pred_region
          %s512 = ssub.s32 16, 16
          %513 = vsyncadd [#allocation12], %s512
          %s515 = sshll.u32 [#allocation13], 4
          %s516 = int_to_ptr.vmem [resolvable:$true] %s515
          %518 = dma.hbm_to_vmem [thread:$0]  %s6, 16, %s516, [#allocation12]
        $region36: #{tpu_custom_call.1} parent=11 // pred_fallthru
          _
        // Predicated region
        $region37: #{tpu_custom_call.1} parent=11 // pred_check
          %p519 = pneg %p214
        $region38: #{tpu_custom_call.1} parent=11 // pred_check_branch
          %521 = sbr.rel (%p519) target = $region40
        $region39: #{tpu_custom_call.1} parent=11 // pred_region
          %s523 = ssub.s32 1024, 1024
          %524 = vsyncadd [#allocation15], %s523
          %s525 = sshll.u32 [#allocation14], 4
          %s526 = int_to_ptr.vmem [resolvable:$true] %s525
          %531 = dma.hbm_to_vmem [thread:$0]  %s7, 1024, %s526, [#allocation15], 64, 64, 4
        $region40: #{tpu_custom_call.1} parent=11 // pred_fallthru
          _
        // Predicated region
        $region41: #{tpu_custom_call.1} parent=11 // pred_check
          %p532 = pneg %p235
        $region42: #{tpu_custom_call.1} parent=11 // pred_check_branch
          %534 = sbr.rel (%p532) target = $region44
        $region43: #{tpu_custom_call.1} parent=11 // pred_region
          %s536 = ssub.s32 16, 16
          %537 = vsyncadd [#allocation15], %s536
          %s539 = sshll.u32 [#allocation16], 4
          %s540 = int_to_ptr.vmem [resolvable:$true] %s539
          %542 = dma.hbm_to_vmem [thread:$0]  %s8, 16, %s540, [#allocation15]
        $region44: #{tpu_custom_call.1} parent=11 // pred_fallthru
          _
        // Predicated region
        $region45: #{tpu_custom_call.1} parent=11 // pred_check
          %p543 = pneg %p256
        $region46: #{tpu_custom_call.1} parent=11 // pred_check_branch
          %545 = sbr.rel (%p543) target = $region48
        $region47: #{tpu_custom_call.1} parent=11 // pred_region
          %s547 = ssub.s32 16, 16
          %548 = vsyncadd [#allocation18], %s547
          %s550 = sshll.u32 [#allocation17], 4
          %s551 = int_to_ptr.vmem [resolvable:$true] %s550
          %553 = dma.hbm_to_vmem [thread:$0]  %s9, 16, %s551, [#allocation18]
        $region48: #{tpu_custom_call.1} parent=11 // pred_fallthru
          _
        // Predicated region
        $region49: #{tpu_custom_call.1} parent=11 // pred_check
          %p554 = pneg %p277
        $region50: #{tpu_custom_call.1} parent=11 // pred_check_branch
          %556 = sbr.rel (%p554) target = $region52
        $region51: #{tpu_custom_call.1} parent=11 // pred_region
          %s558 = ssub.s32 1024, 1024
          %559 = vsyncadd [#allocation18], %s558
          %s560 = sshll.u32 [#allocation19], 4
          %s561 = int_to_ptr.vmem [resolvable:$true] %s560
          %566 = dma.hbm_to_vmem [thread:$0]  %s10, 1024, %s561, [#allocation18], 64, 64, 4
        $region52: #{tpu_custom_call.1} parent=11 // pred_fallthru
          _
        // Predicated region
        $region53: #{tpu_custom_call.1} parent=11 // pred_check
          %p567 = pneg %p298
        $region54: #{tpu_custom_call.1} parent=11 // pred_check_branch
          %569 = sbr.rel (%p567) target = $region56
        $region55: #{tpu_custom_call.1} parent=11 // pred_region
          %s571 = ssub.s32 16, 16
          %572 = vsyncadd [#allocation21], %s571
          %s574 = sshll.u32 [#allocation20], 4
          %s575 = int_to_ptr.vmem [resolvable:$true] %s574
          %577 = dma.hbm_to_vmem [thread:$0]  %s11, 16, %s575, [#allocation21]
        $region56: #{tpu_custom_call.1} parent=11 // pred_fallthru
          _
        // Predicated region
        $region57: #{tpu_custom_call.1} parent=11 // pred_check
          %p578 = pneg %p319
        $region58: #{tpu_custom_call.1} parent=11 // pred_check_branch
          %580 = sbr.rel (%p578) target = $region60
        $region59: #{tpu_custom_call.1} parent=11 // pred_region
          %s582 = ssub.s32 16, 16
          %583 = vsyncadd [#allocation21], %s582
          %s585 = sshll.u32 [#allocation22], 4
          %s586 = int_to_ptr.vmem [resolvable:$true] %s585
          %588 = dma.hbm_to_vmem [thread:$0]  %s12, 16, %s586, [#allocation21]
        $region60: #{tpu_custom_call.1} parent=11 // pred_fallthru
          _
        // Predicated region
        $region61: #{tpu_custom_call.1} parent=11 // pred_check
          %p589 = pneg %p340
        $region62: #{tpu_custom_call.1} parent=11 // pred_check_branch
          %591 = sbr.rel (%p589) target = $region64
        $region63: #{tpu_custom_call.1} parent=11 // pred_region
          %s593 = ssub.s32 16, 16
          %594 = vsyncadd [#allocation24], %s593
          %s596 = sshll.u32 [#allocation23], 4
          %s597 = int_to_ptr.vmem [resolvable:$true] %s596
          %599 = dma.hbm_to_vmem [thread:$0]  %s13, 16, %s597, [#allocation24]
        $region64: #{tpu_custom_call.1} parent=11 // pred_fallthru
          _
        // Predicated region
        $region65: #{tpu_custom_call.1} parent=11 // pred_check
          %p600 = pneg %p361
        $region66: #{tpu_custom_call.1} parent=11 // pred_check_branch
          %602 = sbr.rel (%p600) target = $region68
        $region67: #{tpu_custom_call.1} parent=11 // pred_region
          %s604 = ssub.s32 1024, 1024
          %605 = vsyncadd [#allocation24], %s604
          %s606 = sshll.u32 [#allocation25], 4
          %s607 = int_to_ptr.vmem [resolvable:$true] %s606
          %612 = dma.hbm_to_vmem [thread:$0]  %s14, 1024, %s607, [#allocation24], 64, 64, 4
        $region68: #{tpu_custom_call.1} parent=11 // pred_fallthru
          _
        // Predicated region
        $region69: #{tpu_custom_call.1} parent=11 // pred_check
          %p613 = pneg %p382
        $region70: #{tpu_custom_call.1} parent=11 // pred_check_branch
          %615 = sbr.rel (%p613) target = $region72
        $region71: #{tpu_custom_call.1} parent=11 // pred_region
          %s617 = ssub.s32 16, 16
          %618 = vsyncadd [#allocation27], %s617
          %s620 = sshll.u32 [#allocation26], 4
          %s621 = int_to_ptr.vmem [resolvable:$true] %s620
          %623 = dma.hbm_to_vmem [thread:$0]  %s15, 16, %s621, [#allocation27]
        $region72: #{tpu_custom_call.1} parent=11 // pred_fallthru
          _
      $region12: #{tpu_custom_call.1} parent=5 // pred_fallthru
        _
      %p624 = scmp.lt.s32.totalorder %s41, 2
      // Predicated region
      $region73: #{tpu_custom_call.1} parent=5 // pred_check
        %p625 = pneg %p624
      $region74: #{tpu_custom_call.1} parent=5 // pred_check_branch
        %627 = sbr.rel (%p625) target = $region76
      $region75: #{tpu_custom_call.1} parent=5 // pred_region
        // Predicated region
        $region77: #{tpu_custom_call.1} parent=75 // pred_check
          %p628 = pneg %p61
        $region78: #{tpu_custom_call.1} parent=75 // pred_check_branch
          %630 = sbr.rel (%p628) target = $region80
        $region79: #{tpu_custom_call.1} parent=75 // pred_region
          %s631 = sand.u32 %s51, 1
          %s632 = scalar_lea.sflag [#allocation3], %s631
          %s633 = sand.u32 %s51, 1
          %s634 = smul.addr %s633, 8
          %s635 = scalar_lea.vmem [#allocation2], %s634
          %s637 = ssub.s32 128, 128
          %638 = vsyncadd %s632, %s637
          %s639 = smul.addr %s41, 128
          %s640 = scalar_lea.hbm %s0, %s639
          %s642 = sshll.u32 %s635, 4
          %s643 = int_to_ptr.vmem [resolvable:$true] %s642
          %645 = dma.hbm_to_vmem [thread:$0]  %s640, 128, %s643, %s632
        $region80: #{tpu_custom_call.1} parent=75 // pred_fallthru
          _
      $region76: #{tpu_custom_call.1} parent=5 // pred_fallthru
        _
      %p646 = scmp.le.s32.totalorder 1, %s41
      %p647 = scmp.lt.s32.totalorder %s41, 3
      %p648 = pnand %p646, %p647
      %p649 = pneg %p648
      // Predicated region
      $region81: #{tpu_custom_call.1} parent=5 // pred_check
        _
      $region82: #{tpu_custom_call.1} parent=5 // pred_check_branch
        %651 = sbr.rel (%p648) target = $region84
      $region83: #{tpu_custom_call.1} parent=5 // pred_region
        %s652 = ssub.s32 %s41, 1
        %s653 = sand.u32 %s54, 1
        %s654 = scalar_lea.sflag [#allocation3], %s653
        %s655 = sand.u32 %s54, 1
        %s656 = smul.addr %s655, 8
        %s657 = scalar_lea.vmem [#allocation2], %s656
        // Predicated region
        $region85: #{tpu_custom_call.1} parent=83 // pred_check
          %p658 = pneg %p67
        $region86: #{tpu_custom_call.1} parent=83 // pred_check_branch
          %660 = sbr.rel (%p658) target = $region88
        $region87: #{tpu_custom_call.1} parent=83 // pred_region
          %661 = dma.done %s654, 128
        $region88: #{tpu_custom_call.1} parent=83 // pred_fallthru
          _
        // Predicated region
        $region89: #{tpu_custom_call.1} parent=83 // pred_check
          %p662 = pneg %p88
        $region90: #{tpu_custom_call.1} parent=83 // pred_check_branch
          %664 = sbr.rel (%p662) target = $region92
        $region91: #{tpu_custom_call.1} parent=83 // pred_region
          %665 = dma.done [#allocation6], 1024
        $region92: #{tpu_custom_call.1} parent=83 // pred_fallthru
          _
        // Predicated region
        $region93: #{tpu_custom_call.1} parent=83 // pred_check
          %p666 = pneg %p109
        $region94: #{tpu_custom_call.1} parent=83 // pred_check_branch
          %668 = sbr.rel (%p666) target = $region96
        $region95: #{tpu_custom_call.1} parent=83 // pred_region
          %669 = dma.done [#allocation6], 16
        $region96: #{tpu_custom_call.1} parent=83 // pred_fallthru
          _
        // Predicated region
        $region97: #{tpu_custom_call.1} parent=83 // pred_check
          %p670 = pneg %p130
        $region98: #{tpu_custom_call.1} parent=83 // pred_check_branch
          %672 = sbr.rel (%p670) target = $region100
        $region99: #{tpu_custom_call.1} parent=83 // pred_region
          %673 = dma.done [#allocation9], 16
        $region100: #{tpu_custom_call.1} parent=83 // pred_fallthru
          _
        // Predicated region
        $region101: #{tpu_custom_call.1} parent=83 // pred_check
          %p674 = pneg %p151
        $region102: #{tpu_custom_call.1} parent=83 // pred_check_branch
          %676 = sbr.rel (%p674) target = $region104
        $region103: #{tpu_custom_call.1} parent=83 // pred_region
          %677 = dma.done [#allocation9], 16
        $region104: #{tpu_custom_call.1} parent=83 // pred_fallthru
          _
        // Predicated region
        $region105: #{tpu_custom_call.1} parent=83 // pred_check
          %p678 = pneg %p172
        $region106: #{tpu_custom_call.1} parent=83 // pred_check_branch
          %680 = sbr.rel (%p678) target = $region108
        $region107: #{tpu_custom_call.1} parent=83 // pred_region
          %681 = dma.done [#allocation12], 1024
        $region108: #{tpu_custom_call.1} parent=83 // pred_fallthru
          _
        // Predicated region
        $region109: #{tpu_custom_call.1} parent=83 // pred_check
          %p682 = pneg %p193
        $region110: #{tpu_custom_call.1} parent=83 // pred_check_branch
          %684 = sbr.rel (%p682) target = $region112
        $region111: #{tpu_custom_call.1} parent=83 // pred_region
          %685 = dma.done [#allocation12], 16
        $region112: #{tpu_custom_call.1} parent=83 // pred_fallthru
          _
        // Predicated region
        $region113: #{tpu_custom_call.1} parent=83 // pred_check
          %p686 = pneg %p214
        $region114: #{tpu_custom_call.1} parent=83 // pred_check_branch
          %688 = sbr.rel (%p686) target = $region116
        $region115: #{tpu_custom_call.1} parent=83 // pred_region
          %689 = dma.done [#allocation15], 1024
        $region116: #{tpu_custom_call.1} parent=83 // pred_fallthru
          _
        // Predicated region
        $region117: #{tpu_custom_call.1} parent=83 // pred_check
          %p690 = pneg %p235
        $region118: #{tpu_custom_call.1} parent=83 // pred_check_branch
          %692 = sbr.rel (%p690) target = $region120
        $region119: #{tpu_custom_call.1} parent=83 // pred_region
          %693 = dma.done [#allocation15], 16
        $region120: #{tpu_custom_call.1} parent=83 // pred_fallthru
          _
        // Predicated region
        $region121: #{tpu_custom_call.1} parent=83 // pred_check
          %p694 = pneg %p256
        $region122: #{tpu_custom_call.1} parent=83 // pred_check_branch
          %696 = sbr.rel (%p694) target = $region124
        $region123: #{tpu_custom_call.1} parent=83 // pred_region
          %697 = dma.done [#allocation18], 16
        $region124: #{tpu_custom_call.1} parent=83 // pred_fallthru
          _
        // Predicated region
        $region125: #{tpu_custom_call.1} parent=83 // pred_check
          %p698 = pneg %p277
        $region126: #{tpu_custom_call.1} parent=83 // pred_check_branch
          %700 = sbr.rel (%p698) target = $region128
        $region127: #{tpu_custom_call.1} parent=83 // pred_region
          %701 = dma.done [#allocation18], 1024
        $region128: #{tpu_custom_call.1} parent=83 // pred_fallthru
          _
        // Predicated region
        $region129: #{tpu_custom_call.1} parent=83 // pred_check
          %p702 = pneg %p298
        $region130: #{tpu_custom_call.1} parent=83 // pred_check_branch
          %704 = sbr.rel (%p702) target = $region132
        $region131: #{tpu_custom_call.1} parent=83 // pred_region
          %705 = dma.done [#allocation21], 16
        $region132: #{tpu_custom_call.1} parent=83 // pred_fallthru
          _
        // Predicated region
        $region133: #{tpu_custom_call.1} parent=83 // pred_check
          %p706 = pneg %p319
        $region134: #{tpu_custom_call.1} parent=83 // pred_check_branch
          %708 = sbr.rel (%p706) target = $region136
        $region135: #{tpu_custom_call.1} parent=83 // pred_region
          %709 = dma.done [#allocation21], 16
        $region136: #{tpu_custom_call.1} parent=83 // pred_fallthru
          _
        // Predicated region
        $region137: #{tpu_custom_call.1} parent=83 // pred_check
          %p710 = pneg %p340
        $region138: #{tpu_custom_call.1} parent=83 // pred_check_branch
          %712 = sbr.rel (%p710) target = $region140
        $region139: #{tpu_custom_call.1} parent=83 // pred_region
          %713 = dma.done [#allocation24], 16
        $region140: #{tpu_custom_call.1} parent=83 // pred_fallthru
          _
        // Predicated region
        $region141: #{tpu_custom_call.1} parent=83 // pred_check
          %p714 = pneg %p361
        $region142: #{tpu_custom_call.1} parent=83 // pred_check_branch
          %716 = sbr.rel (%p714) target = $region144
        $region143: #{tpu_custom_call.1} parent=83 // pred_region
          %717 = dma.done [#allocation24], 1024
        $region144: #{tpu_custom_call.1} parent=83 // pred_fallthru
          _
        // Predicated region
        $region145: #{tpu_custom_call.1} parent=83 // pred_check
          %p718 = pneg %p382
        $region146: #{tpu_custom_call.1} parent=83 // pred_check_branch
          %720 = sbr.rel (%p718) target = $region148
        $region147: #{tpu_custom_call.1} parent=83 // pred_region
          %721 = dma.done [#allocation27], 16
        $region148: #{tpu_custom_call.1} parent=83 // pred_fallthru
          _
        %s722 = sand.u32 %s54, 1
        %s723 = scalar_lea.sflag [#allocation3], %s722
        %s724 = sand.u32 %s54, 1
        %s725 = smul.addr %s724, 8
        %s726 = scalar_lea.vmem [#allocation2], %s725
        %p727 = pneg %p67
        %p728 = pneg %p64
        %p729 = pneg %p88
        %p730 = pneg %p85
        %p731 = pneg %p109
        %p732 = pneg %p106
        %p733 = pneg %p130
        %p734 = pneg %p127
        %p735 = pneg %p151
        %p736 = pneg %p148
        %p737 = pneg %p172
        %p738 = pneg %p169
        %p739 = pneg %p193
        %p740 = pneg %p190
        %p741 = pneg %p214
        %p742 = pneg %p211
        %p743 = pneg %p235
        %p744 = pneg %p232
        %p745 = pneg %p256
        %p746 = pneg %p253
        %p747 = pneg %p277
        %p748 = pneg %p274
        %p749 = pneg %p298
        %p750 = pneg %p295
        %p751 = pneg %p319
        %p752 = pneg %p316
        %p753 = pneg %p340
        %p754 = pneg %p337
        %p755 = pneg %p361
        %p756 = pneg %p358
        %p757 = pneg %p382
        %p758 = pneg %p379
        %p759 = pneg %p408
        %p760 = pneg %p405
        %s761 = sand.u32 %s395, 1
        %s762 = scalar_lea.sflag [#allocation4], %s761
        %s763 = sand.u32 %s395, 1
        %s764 = smul.addr %s763, 8
        %s765 = scalar_lea.vmem [#allocation28], %s764
        %p766 = pneg %p434
        %p767 = pneg %p431
        %s768 = sand.u32 %s421, 1
        %s769 = scalar_lea.sflag [#allocation30], %s768
        %s770 = sand.u32 %s421, 1
        %s771 = smul.addr %s770, 8
        %s772 = scalar_lea.vmem [#allocation29], %s771
        %v774 = vld [vmem:[%s657] sm:$0xff]
        %v775 = vmul.f32 %v774, %v774
        %776 = vadd.xlane.f32.xlu0 %v775
        %v777 = vpop.xlane.xlu0 %776
        %v778 = vrsqrt.pop %v777
        %v779 = vmul.f32 %v777, %v778
        %vm780 = vcmp.eq.f32.partialorder %v777, inf
        %v781 = vsel %vm780, %v777, %v779
        %vm782 = vcmp.eq.f32.partialorder %v777, 0.0
        %v783 = vand.u32 %v777, 2147483648
        %v784 = vsel %vm782, %v783, %v781
        %v785 = vmax.f32 %v784, 0.0
        %v786 = vmin.f32 %v785, 0.99999
        %v787 = vadd.f32 %v786, 1.0
        %v788 = vsub.f32 1.0, %v786
        %v789 = vrcp.pop %v788
        %v790 = vmul.f32 %v787, %v789
        %v791 = vlog2.pop %v790
        %v792 = vmul.f32 %v791, 0.6931472
        %v793 = vmul.f32 %v792, 0.5
        %v794 = vmax.f32 %v784, 1e-05
        %v795 = vrcp.pop %v794
        %v796 = vmul.f32 %v793, %v795
        %v797 = vmul.f32 %v796, %v774
        %v798 = vld [vmem:[#allocation5] sm:$0xf]
        %v799 = vld [vmem:[#allocation5 + $0x4] sm:$0xf]
        %v800 = vld [vmem:[#allocation5 + $0x8] sm:$0xf]
        %v801 = vld [vmem:[#allocation5 + $0xc] sm:$0xf]
        %v802 = vld [vmem:[#allocation5 + $0x10] sm:$0xf]
        %v803 = vld [vmem:[#allocation5 + $0x14] sm:$0xf]
        %v804 = vld [vmem:[#allocation5 + $0x18] sm:$0xf]
        %v805 = vld [vmem:[#allocation5 + $0x1c] sm:$0xf]
        %v806 = vld [vmem:[#allocation5 + $0x20] sm:$0xf]
        %v807 = vld [vmem:[#allocation5 + $0x24] sm:$0xf]
        %v808 = vld [vmem:[#allocation5 + $0x28] sm:$0xf]
        %v809 = vld [vmem:[#allocation5 + $0x2c] sm:$0xf]
        %v810 = vld [vmem:[#allocation5 + $0x30] sm:$0xf]
        %v811 = vld [vmem:[#allocation5 + $0x34] sm:$0xf]
        %v812 = vld [vmem:[#allocation5 + $0x38] sm:$0xf]
        %v813 = vld [vmem:[#allocation5 + $0x3c] sm:$0xf]
        %v814 = vld [vmem:[#allocation7] sm:$0x1]
        %v815 = vld [vmem:[#allocation8] sm:$0x1]
        %v816 = vld [vmem:[#allocation10] sm:$0x1]
        %v817 = vld [vmem:[#allocation11] sm:$0xf]
        %v818 = vld [vmem:[#allocation11 + $0x4] sm:$0xf]
        %v819 = vld [vmem:[#allocation11 + $0x8] sm:$0xf]
        %v820 = vld [vmem:[#allocation11 + $0xc] sm:$0xf]
        %v821 = vld [vmem:[#allocation11 + $0x10] sm:$0xf]
        %v822 = vld [vmem:[#allocation11 + $0x14] sm:$0xf]
        %v823 = vld [vmem:[#allocation11 + $0x18] sm:$0xf]
        %v824 = vld [vmem:[#allocation11 + $0x1c] sm:$0xf]
        %v825 = vld [vmem:[#allocation11 + $0x20] sm:$0xf]
        %v826 = vld [vmem:[#allocation11 + $0x24] sm:$0xf]
        %v827 = vld [vmem:[#allocation11 + $0x28] sm:$0xf]
        %v828 = vld [vmem:[#allocation11 + $0x2c] sm:$0xf]
        %v829 = vld [vmem:[#allocation11 + $0x30] sm:$0xf]
        %v830 = vld [vmem:[#allocation11 + $0x34] sm:$0xf]
        %v831 = vld [vmem:[#allocation11 + $0x38] sm:$0xf]
        %v832 = vld [vmem:[#allocation11 + $0x3c] sm:$0xf]
        %v833 = vld [vmem:[#allocation13] sm:$0x1]
        %v834 = vpack.c.bf16 %v797, %v797
        %v836 = vlaneseq
        %v837 = vshrl.u32 %v836, 7
        %v838 = vsub.s32 0, %v837
        %v839 = vrot.slane %v814, %v838
        %v857 = vunpack.c.l.b16 %v798
        %v858 = vunpack.c.l.b16 %v799
        %v859 = vunpack.c.l.b16 %v800
        %v860 = vunpack.c.l.b16 %v801
        %v861 = vunpack.c.l.b16 %v802
        %v862 = vunpack.c.l.b16 %v803
        %v863 = vunpack.c.l.b16 %v804
        %v864 = vunpack.c.l.b16 %v805
        %v865 = vunpack.c.l.b16 %v806
        %v866 = vunpack.c.l.b16 %v807
        %v867 = vunpack.c.l.b16 %v808
        %v868 = vunpack.c.l.b16 %v809
        %v869 = vunpack.c.l.b16 %v810
        %v870 = vunpack.c.l.b16 %v811
        %v871 = vunpack.c.l.b16 %v812
        %v872 = vunpack.c.l.b16 %v813
        %v873 = vpack.c.b16 %v858, %v857
        %v874 = vpack.c.b16 %v860, %v859
        %v875 = vpack.c.b16 %v862, %v861
        %v876 = vpack.c.b16 %v864, %v863
        %v877 = vpack.c.b16 %v866, %v865
        %v878 = vpack.c.b16 %v868, %v867
        %v879 = vpack.c.b16 %v870, %v869
        %v880 = vpack.c.b16 %v872, %v871
        %889 = vmatprep.subr.bf16.mxu0 0
        %890 = vmatpush1.bf16.msra.mxu0 %v873
        %891 = vmatprep.subr.bf16.mxu0 0
        %892 = vmatpush1.bf16.msra.mxu0 %v874
        %893 = vmatprep.subr.bf16.mxu0 0
        %894 = vmatpush1.bf16.msra.mxu0 %v875
        %895 = vmatprep.subr.bf16.mxu0 0
        %896 = vmatpush1.bf16.msra.mxu0 %v876
        %897 = vmatprep.subr.bf16.mxu0 0
        %898 = vmatpush1.bf16.msra.mxu0 %v877
        %899 = vmatprep.subr.bf16.mxu0 0
        %900 = vmatpush1.bf16.msra.mxu0 %v878
        %901 = vmatprep.subr.bf16.mxu0 0
        %902 = vmatpush1.bf16.msra.mxu0 %v879
        %903 = vmatprep.subr.bf16.mxu0 0
        %904 = vmatpush1.bf16.msra.mxu0 %v880
        %905 = vmatprep.subr.bf16.mxu0 0
        %906 = vmatpush1.bf16.msra.mxu0 0
        %907 = vmatprep.subr.bf16.mxu0 0
        %908 = vmatpush1.bf16.msra.mxu0 0
        %909 = vmatprep.subr.bf16.mxu0 0
        %910 = vmatpush1.bf16.msra.mxu0 0
        %911 = vmatprep.subr.bf16.mxu0 0
        %912 = vmatpush1.bf16.msra.mxu0 0
        %913 = vmatprep.subr.bf16.mxu0 0
        %914 = vmatpush1.bf16.msra.mxu0 0
        %915 = vmatprep.subr.bf16.mxu0 0
        %916 = vmatpush1.bf16.msra.mxu0 0
        %917 = vmatprep.subr.bf16.mxu0 0
        %918 = vmatpush1.bf16.msra.mxu0 0
        %919 = vmatprep.subr.bf16.mxu0 0
        %920 = vmatpush1.bf16.msra.mxu0 0
        %921 = vmatprep.mubr.bf16.mxu0 0
        %922 = vmatmul.mubr.bf16.gmra.mrb[0].mxu0 %v834
        %v923 = vpop.f32.mrb[0].mxu0
        %v924 = vadd.f32 %v839, %v923
        %v925 = vpop.f32.mrb[0].mxu0
        %v926 = vpop.f32.mrb[0].mxu0
        %v927 = vpop.f32.mrb[0].mxu0
        %928 = vdwg.mxu0
        %v929 = vlaneseq
        %v930 = vand.u32 %v929, 127
        %vm931 = vcmp.lt.s32.totalorder %v930, 64
        %932 = vadd.xlane.f32.xlu0 %v924
        %v933 = vpop.xlane.xlu0 %932
        %v934 = vmul.f32 %v933, 0.015625
        %v935 = vsub.f32 %v924, %v934
        %v936 = vmul.f32 %v935, %v935
        %v937 = vsel %vm931, %v936, 0.0
        %938 = vadd.xlane.f32.xlu0 %v937
        %v939 = vpop.xlane.xlu0 %938
        %v940 = vmul.f32 %v939, 0.015625
        %v941 = vadd.f32 %v940, 1e-05
        %v942 = vrsqrt.pop %v941
        %v943 = vmul.f32 %v935, %v942
        %v945 = vlaneseq
        %v946 = vshrl.u32 %v945, 7
        %v947 = vsub.s32 0, %v946
        %v948 = vrot.slane %v815, %v947
        %v950 = vmul.f32 %v943, %v948
        %v952 = vlaneseq
        %v953 = vshrl.u32 %v952, 7
        %v954 = vsub.s32 0, %v953
        %v955 = vrot.slane %v816, %v954
        %v957 = vadd.f32 %v950, %v955
        %v958 = vmul.f32 %v957, 0.5
        %v959 = vmul.f32 %v957, 0.044715
        %v960 = vmul.f32 %v959, %v957
        %v961 = vmul.f32 %v960, %v957
        %v962 = vadd.f32 %v957, %v961
        %v963 = vmul.f32 %v962, 0.7978846
        %v964 = vtanh.pop %v963
        %v965 = vadd.f32 %v964, 1.0
        %v966 = vmul.f32 %v958, %v965
        %v967 = vpack.c.bf16 %v966, %v966
        %v969 = vlaneseq
        %v970 = vshrl.u32 %v969, 7
        %v971 = vsub.s32 0, %v970
        %v972 = vrot.slane %v833, %v971
        %v990 = vunpack.c.l.b16 %v817
        %v991 = vunpack.c.l.b16 %v818
        %v992 = vunpack.c.l.b16 %v819
        %v993 = vunpack.c.l.b16 %v820
        %v994 = vunpack.c.l.b16 %v821
        %v995 = vunpack.c.l.b16 %v822
        %v996 = vunpack.c.l.b16 %v823
        %v997 = vunpack.c.l.b16 %v824
        %v998 = vunpack.c.l.b16 %v825
        %v999 = vunpack.c.l.b16 %v826
        %v1000 = vunpack.c.l.b16 %v827
        %v1001 = vunpack.c.l.b16 %v828
        %v1002 = vunpack.c.l.b16 %v829
        %v1003 = vunpack.c.l.b16 %v830
        %v1004 = vunpack.c.l.b16 %v831
        %v1005 = vunpack.c.l.b16 %v832
        %v1006 = vpack.c.b16 %v991, %v990
        %v1007 = vpack.c.b16 %v993, %v992
        %v1008 = vpack.c.b16 %v995, %v994
        %v1009 = vpack.c.b16 %v997, %v996
        %v1010 = vpack.c.b16 %v999, %v998
        %v1011 = vpack.c.b16 %v1001, %v1000
        %v1012 = vpack.c.b16 %v1003, %v1002
        %v1013 = vpack.c.b16 %v1005, %v1004
        %1022 = vmatprep.subr.bf16.mxu0 0
        %1023 = vmatpush1.bf16.msra.mxu0 %v1006
        %1024 = vmatprep.subr.bf16.mxu0 0
        %1025 = vmatpush1.bf16.msra.mxu0 %v1007
        %1026 = vmatprep.subr.bf16.mxu0 0
        %1027 = vmatpush1.bf16.msra.mxu0 %v1008
        %1028 = vmatprep.subr.bf16.mxu0 0
        %1029 = vmatpush1.bf16.msra.mxu0 %v1009
        %1030 = vmatprep.subr.bf16.mxu0 0
        %1031 = vmatpush1.bf16.msra.mxu0 %v1010
        %1032 = vmatprep.subr.bf16.mxu0 0
        %1033 = vmatpush1.bf16.msra.mxu0 %v1011
        %1034 = vmatprep.subr.bf16.mxu0 0
        %1035 = vmatpush1.bf16.msra.mxu0 %v1012
        %1036 = vmatprep.subr.bf16.mxu0 0
        %1037 = vmatpush1.bf16.msra.mxu0 %v1013
        %1038 = vmatprep.subr.bf16.mxu0 0
        %1039 = vmatpush1.bf16.msra.mxu0 0
        %1040 = vmatprep.subr.bf16.mxu0 0
        %1041 = vmatpush1.bf16.msra.mxu0 0
        %1042 = vmatprep.subr.bf16.mxu0 0
        %1043 = vmatpush1.bf16.msra.mxu0 0
        %1044 = vmatprep.subr.bf16.mxu0 0
        %1045 = vmatpush1.bf16.msra.mxu0 0
        %1046 = vmatprep.subr.bf16.mxu0 0
        %1047 = vmatpush1.bf16.msra.mxu0 0
        %1048 = vmatprep.subr.bf16.mxu0 0
        %1049 = vmatpush1.bf16.msra.mxu0 0
        %1050 = vmatprep.subr.bf16.mxu0 0
        %1051 = vmatpush1.bf16.msra.mxu0 0
        %1052 = vmatprep.subr.bf16.mxu0 0
        %1053 = vmatpush1.bf16.msra.mxu0 0
        %1054 = vmatprep.mubr.bf16.mxu0 0
        %1055 = vmatmul.mubr.bf16.gmra.mrb[0].mxu0 %v967
        %v1056 = vpop.f32.mrb[0].mxu0
        %v1057 = vadd.f32 %v972, %v1056
        %v1058 = vpop.f32.mrb[0].mxu0
        %v1059 = vpop.f32.mrb[0].mxu0
        %v1060 = vpop.f32.mrb[0].mxu0
        %1061 = vdwg.mxu0
        %v1062 = vmul.f32 %v1057, %v1057
        %1063 = vadd.xlane.f32.xlu0 %v1062
        %v1064 = vpop.xlane.xlu0 %1063
        %v1065 = vrsqrt.pop %v1064
        %v1066 = vmul.f32 %v1064, %v1065
        %vm1067 = vcmp.eq.f32.partialorder %v1064, inf
        %v1068 = vsel %vm1067, %v1064, %v1066
        %vm1069 = vcmp.eq.f32.partialorder %v1064, 0.0
        %v1070 = vand.u32 %v1064, 2147483648
        %v1071 = vsel %vm1069, %v1070, %v1068
        %v1072 = vtanh.pop %v1071
        %v1073 = vmax.f32 %v1071, 1e-05
        %v1074 = vrcp.pop %v1073
        %v1075 = vmul.f32 %v1072, %v1074
        %v1076 = vmul.f32 %v1075, %v1057
        %1077 = vst [vmem:[%s772] sm:$0xff] %v1076
        %v1078 = vld [vmem:[#allocation14] sm:$0xf]
        %v1079 = vld [vmem:[#allocation14 + $0x4] sm:$0xf]
        %v1080 = vld [vmem:[#allocation14 + $0x8] sm:$0xf]
        %v1081 = vld [vmem:[#allocation14 + $0xc] sm:$0xf]
        %v1082 = vld [vmem:[#allocation14 + $0x10] sm:$0xf]
        %v1083 = vld [vmem:[#allocation14 + $0x14] sm:$0xf]
        %v1084 = vld [vmem:[#allocation14 + $0x18] sm:$0xf]
        %v1085 = vld [vmem:[#allocation14 + $0x1c] sm:$0xf]
        %v1086 = vld [vmem:[#allocation14 + $0x20] sm:$0xf]
        %v1087 = vld [vmem:[#allocation14 + $0x24] sm:$0xf]
        %v1088 = vld [vmem:[#allocation14 + $0x28] sm:$0xf]
        %v1089 = vld [vmem:[#allocation14 + $0x2c] sm:$0xf]
        %v1090 = vld [vmem:[#allocation14 + $0x30] sm:$0xf]
        %v1091 = vld [vmem:[#allocation14 + $0x34] sm:$0xf]
        %v1092 = vld [vmem:[#allocation14 + $0x38] sm:$0xf]
        %v1093 = vld [vmem:[#allocation14 + $0x3c] sm:$0xf]
        %v1094 = vld [vmem:[#allocation16] sm:$0x1]
        %v1095 = vld [vmem:[#allocation17] sm:$0x1]
        %v1096 = vmul.f32 %v1076, %v1076
        %1097 = vadd.xlane.f32.xlu0 %v1096
        %v1098 = vpop.xlane.xlu0 %1097
        %v1099 = vpack.c.bf16 %v1076, %v1076
        %v1116 = vunpack.c.l.b16 %v1078
        %v1117 = vunpack.c.l.b16 %v1079
        %v1118 = vunpack.c.l.b16 %v1080
        %v1119 = vunpack.c.l.b16 %v1081
        %v1120 = vunpack.c.l.b16 %v1082
        %v1121 = vunpack.c.l.b16 %v1083
        %v1122 = vunpack.c.l.b16 %v1084
        %v1123 = vunpack.c.l.b16 %v1085
        %v1124 = vunpack.c.l.b16 %v1086
        %v1125 = vunpack.c.l.b16 %v1087
        %v1126 = vunpack.c.l.b16 %v1088
        %v1127 = vunpack.c.l.b16 %v1089
        %v1128 = vunpack.c.l.b16 %v1090
        %v1129 = vunpack.c.l.b16 %v1091
        %v1130 = vunpack.c.l.b16 %v1092
        %v1131 = vunpack.c.l.b16 %v1093
        %v1132 = vpack.c.b16 %v1117, %v1116
        %v1133 = vpack.c.b16 %v1119, %v1118
        %v1134 = vpack.c.b16 %v1121, %v1120
        %v1135 = vpack.c.b16 %v1123, %v1122
        %v1136 = vpack.c.b16 %v1125, %v1124
        %v1137 = vpack.c.b16 %v1127, %v1126
        %v1138 = vpack.c.b16 %v1129, %v1128
        %v1139 = vpack.c.b16 %v1131, %v1130
        %1148 = vmatprep.subr.bf16.mxu0 0
        %1149 = vmatpush1.bf16.xpose.msra.mxu0 %v1132
        %1150 = vmatprep.subr.bf16.mxu0 0
        %1151 = vmatpush1.bf16.xpose.msra.mxu0 %v1133
        %1152 = vmatprep.subr.bf16.mxu0 0
        %1153 = vmatpush1.bf16.xpose.msra.mxu0 %v1134
        %1154 = vmatprep.subr.bf16.mxu0 0
        %1155 = vmatpush1.bf16.xpose.msra.mxu0 %v1135
        %1156 = vmatprep.subr.bf16.mxu0 0
        %1157 = vmatpush1.bf16.xpose.msra.mxu0 %v1136
        %1158 = vmatprep.subr.bf16.mxu0 0
        %1159 = vmatpush1.bf16.xpose.msra.mxu0 %v1137
        %1160 = vmatprep.subr.bf16.mxu0 0
        %1161 = vmatpush1.bf16.xpose.msra.mxu0 %v1138
        %1162 = vmatprep.subr.bf16.mxu0 0
        %1163 = vmatpush1.bf16.xpose.msra.mxu0 %v1139
        %1164 = vmatprep.subr.bf16.mxu0 0
        %1165 = vmatpush1.bf16.xpose.msra.mxu0 0
        %1166 = vmatprep.subr.bf16.mxu0 0
        %1167 = vmatpush1.bf16.xpose.msra.mxu0 0
        %1168 = vmatprep.subr.bf16.mxu0 0
        %1169 = vmatpush1.bf16.xpose.msra.mxu0 0
        %1170 = vmatprep.subr.bf16.mxu0 0
        %1171 = vmatpush1.bf16.xpose.msra.mxu0 0
        %1172 = vmatprep.subr.bf16.mxu0 0
        %1173 = vmatpush1.bf16.xpose.msra.mxu0 0
        %1174 = vmatprep.subr.bf16.mxu0 0
        %1175 = vmatpush1.bf16.xpose.msra.mxu0 0
        %1176 = vmatprep.subr.bf16.mxu0 0
        %1177 = vmatpush1.bf16.xpose.msra.mxu0 0
        %1178 = vmatprep.subr.bf16.mxu0 0
        %1179 = vmatpush1.bf16.xpose.msra.mxu0 0
        %1180 = vmatprep.mubr.bf16.mxu0 0
        %1181 = vmatmul.mubr.bf16.gmra.mrb[0].mxu0 %v1099
        %v1182 = vpop.f32.mrb[0].mxu0
        %v1183 = vadd.f32 0.0, %v1182
        %v1184 = vpop.f32.mrb[0].mxu0
        %v1185 = vpop.f32.mrb[0].mxu0
        %v1186 = vpop.f32.mrb[0].mxu0
        %1187 = vdwg.mxu0
        %v1189 = vlaneseq
        %v1190 = vshrl.u32 %v1189, 7
        %v1191 = vsub.s32 0, %v1190
        %v1192 = vrot.slane %v1094, %v1191
        %v1194 = vadd.f32 %v1098, %v1192
        %v1195 = vmul.f32 %v1183, 2.0
        %v1196 = vsub.f32 %v1194, %v1195
        %v1197 = vmax.f32 %v1196, 0.0
        %v1198 = vsub.f32 1.0, %v1098
        %v1199 = vsub.f32 1.0, %v1094
        %v1201 = vlaneseq
        %v1202 = vshrl.u32 %v1201, 7
        %v1203 = vsub.s32 0, %v1202
        %v1204 = vrot.slane %v1199, %v1203
        %v1206 = vmul.f32 %v1198, %v1204
        %v1207 = vmax.f32 %v1206, 1e-05
        %v1208 = vmul.f32 %v1197, 2.0
        %v1209 = vrcp.pop %v1207
        %v1210 = vmul.f32 %v1208, %v1209
        %v1211 = vadd.f32 %v1210, 1.0
        %v1212 = vmax.f32 %v1211, 1.0
        %v1213 = vsub.f32 %v1212, 1.0
        %v1214 = vadd.f32 %v1212, 1.0
        %v1215 = vmul.f32 %v1213, %v1214
        %v1216 = vrsqrt.pop %v1215
        %v1217 = vmul.f32 %v1215, %v1216
        %vm1218 = vcmp.eq.f32.partialorder %v1215, inf
        %v1219 = vsel %vm1218, %v1215, %v1217
        %vm1220 = vcmp.eq.f32.partialorder %v1215, 0.0
        %v1221 = vand.u32 %v1215, 2147483648
        %v1222 = vsel %vm1220, %v1221, %v1219
        %v1223 = vadd.f32 %v1212, %v1222
        %v1224 = vlog2.pop %v1223
        %v1225 = vmul.f32 %v1224, 0.6931472
        %v1227 = vlaneseq
        %v1228 = vshrl.u32 %v1227, 7
        %v1229 = vsub.s32 0, %v1228
        %v1230 = vrot.slane %v1095, %v1229
        %v1232 = vmul.f32 %v1225, %v1230
        %vm1233 = vcmp.lt.s32.totalorder %v930, 16
        %v1234 = vsel %vm1233, %v1232, 1e+30
        loop: start=0, step=1, limit=4
        $region149: #{tpu_custom_call.1} parent=83 // loop_pre_header
          _
        $region150: #{tpu_custom_call.1} parent=83 // loop_header
          %s1236 = sphi 0, %s1240
          %p1237 = scmp.ge.s32.totalorder %s1236, 4
          %v1241 = vphi %v1234, %v1267
          %v1242 = vphi 0.0, %v1266
        $region151: #{tpu_custom_call.1} parent=83 // loop_header_branch
          %1239 = sbr.rel (%p1237) target = $region155
        $region152: #{tpu_custom_call.1} parent=83 // loop_body
          %1243 = vmin.xlane.f32.xlu0 %v1241
          %v1244 = vpop.xlane.xlu0 %1243
          %vm1245 = vcmp.eq.f32.partialorder %v1241, %v1244
          %v1246 = vsel %vm1245, %v930, 128
          %v1247 = vand.u32 %v1246, 65535
          %v1248 = vshra.s32 %v1246, 16
          %v1249 = vcvt.s32.f32 %v1247
          %v1250 = vcvt.s32.f32 %v1248
          %1251 = vmin.xlane.f32.xlu0 %v1250
          %v1252 = vpop.xlane.xlu0 %1251
          %vm1253 = vcmp.eq.f32.partialorder %v1250, %v1252
          %v1254 = vsel %vm1253, %v1249, inf
          %1255 = vmin.xlane.f32.xlu0 %v1254
          %v1256 = vpop.xlane.xlu0 %1255
          %v1257 = vcvt.f32.s32 %v1256
          %v1258 = vcvt.f32.s32 %v1252
          %v1259 = vshll.u32 %v1258, 16
          %v1260 = vadd.s32 %v1259, %v1257
          %vm1261 = vcmp.eq.s32.totalorder %v930, %v1260
          %v1262 = vsub.f32 0.0, %v1244
          %v1263 = vmul.f32 %v1262, 1.442695
          %v1264 = vpow.pop %v1263
          %v1265 = vsel %vm1261, %v1264, 0.0
          %v1266 = vadd.f32 %v1242, %v1265
          %v1267 = vsel %vm1261, 1e+30, %v1241
        $region153: #{tpu_custom_call.1} parent=83 // loop_footer
          %s1240 = sadd.s32 1, %s1236
        $region154: #{tpu_custom_call.1} parent=83 // loop_footer_branch
          %1235 = sbr.rel target = $region150
        $region155: #{tpu_custom_call.1} parent=83 // loop_exit
          _
        %v1268 = vpack.c.bf16 %v1242, %v1242
        %1269 = vmatprep.subr.bf16.mxu0 0
        %1270 = vmatpush1.bf16.msra.mxu0 %v1132
        %1271 = vmatprep.subr.bf16.mxu0 0
        %1272 = vmatpush1.bf16.msra.mxu0 %v1133
        %1273 = vmatprep.subr.bf16.mxu0 0
        %1274 = vmatpush1.bf16.msra.mxu0 %v1134
        %1275 = vmatprep.subr.bf16.mxu0 0
        %1276 = vmatpush1.bf16.msra.mxu0 %v1135
        %1277 = vmatprep.subr.bf16.mxu0 0
        %1278 = vmatpush1.bf16.msra.mxu0 %v1136
        %1279 = vmatprep.subr.bf16.mxu0 0
        %1280 = vmatpush1.bf16.msra.mxu0 %v1137
        %1281 = vmatprep.subr.bf16.mxu0 0
        %1282 = vmatpush1.bf16.msra.mxu0 %v1138
        %1283 = vmatprep.subr.bf16.mxu0 0
        %1284 = vmatpush1.bf16.msra.mxu0 %v1139
        %1285 = vmatprep.subr.bf16.mxu0 0
        %1286 = vmatpush1.bf16.msra.mxu0 0
        %1287 = vmatprep.subr.bf16.mxu0 0
        %1288 = vmatpush1.bf16.msra.mxu0 0
        %1289 = vmatprep.subr.bf16.mxu0 0
        %1290 = vmatpush1.bf16.msra.mxu0 0
        %1291 = vmatprep.subr.bf16.mxu0 0
        %1292 = vmatpush1.bf16.msra.mxu0 0
        %1293 = vmatprep.subr.bf16.mxu0 0
        %1294 = vmatpush1.bf16.msra.mxu0 0
        %1295 = vmatprep.subr.bf16.mxu0 0
        %1296 = vmatpush1.bf16.msra.mxu0 0
        %1297 = vmatprep.subr.bf16.mxu0 0
        %1298 = vmatpush1.bf16.msra.mxu0 0
        %1299 = vmatprep.subr.bf16.mxu0 0
        %1300 = vmatpush1.bf16.msra.mxu0 0
        %1301 = vmatprep.mubr.bf16.mxu0 0
        %1302 = vmatmul.mubr.bf16.gmra.mrb[0].mxu0 %v1268
        %v1303 = vpop.f32.mrb[0].mxu0
        %v1304 = vadd.f32 0.0, %v1303
        %v1305 = vpop.f32.mrb[0].mxu0
        %v1306 = vpop.f32.mrb[0].mxu0
        %v1307 = vpop.f32.mrb[0].mxu0
        %1308 = vdwg.mxu0
        %v1309 = vmul.f32 %v1304, %v1304
        %1310 = vadd.xlane.f32.xlu0 %v1309
        %v1311 = vpop.xlane.xlu0 %1310
        %v1312 = vrsqrt.pop %v1311
        %v1313 = vmul.f32 %v1311, %v1312
        %vm1314 = vcmp.eq.f32.partialorder %v1311, inf
        %v1315 = vsel %vm1314, %v1311, %v1313
        %vm1316 = vcmp.eq.f32.partialorder %v1311, 0.0
        %v1317 = vand.u32 %v1311, 2147483648
        %v1318 = vsel %vm1316, %v1317, %v1315
        %v1319 = vmax.f32 %v1318, 0.0
        %v1320 = vmin.f32 %v1319, 0.99999
        %v1321 = vadd.f32 %v1320, 1.0
        %v1322 = vsub.f32 1.0, %v1320
        %v1323 = vrcp.pop %v1322
        %v1324 = vmul.f32 %v1321, %v1323
        %v1325 = vlog2.pop %v1324
        %v1326 = vmul.f32 %v1325, 0.6931472
        %v1327 = vmul.f32 %v1326, 0.5
        %v1328 = vmax.f32 %v1318, 1e-05
        %v1329 = vrcp.pop %v1328
        %v1330 = vmul.f32 %v1327, %v1329
        %v1331 = vmul.f32 %v1330, %v1304
        %v1332 = vld [vmem:[#allocation19] sm:$0xf]
        %v1333 = vld [vmem:[#allocation19 + $0x4] sm:$0xf]
        %v1334 = vld [vmem:[#allocation19 + $0x8] sm:$0xf]
        %v1335 = vld [vmem:[#allocation19 + $0xc] sm:$0xf]
        %v1336 = vld [vmem:[#allocation19 + $0x10] sm:$0xf]
        %v1337 = vld [vmem:[#allocation19 + $0x14] sm:$0xf]
        %v1338 = vld [vmem:[#allocation19 + $0x18] sm:$0xf]
        %v1339 = vld [vmem:[#allocation19 + $0x1c] sm:$0xf]
        %v1340 = vld [vmem:[#allocation19 + $0x20] sm:$0xf]
        %v1341 = vld [vmem:[#allocation19 + $0x24] sm:$0xf]
        %v1342 = vld [vmem:[#allocation19 + $0x28] sm:$0xf]
        %v1343 = vld [vmem:[#allocation19 + $0x2c] sm:$0xf]
        %v1344 = vld [vmem:[#allocation19 + $0x30] sm:$0xf]
        %v1345 = vld [vmem:[#allocation19 + $0x34] sm:$0xf]
        %v1346 = vld [vmem:[#allocation19 + $0x38] sm:$0xf]
        %v1347 = vld [vmem:[#allocation19 + $0x3c] sm:$0xf]
        %v1348 = vld [vmem:[#allocation20] sm:$0x1]
        %v1349 = vld [vmem:[#allocation22] sm:$0x1]
        %v1350 = vld [vmem:[#allocation23] sm:$0x1]
        %v1351 = vld [vmem:[#allocation25] sm:$0xf]
        %v1352 = vld [vmem:[#allocation25 + $0x4] sm:$0xf]
        %v1353 = vld [vmem:[#allocation25 + $0x8] sm:$0xf]
        %v1354 = vld [vmem:[#allocation25 + $0xc] sm:$0xf]
        %v1355 = vld [vmem:[#allocation25 + $0x10] sm:$0xf]
        %v1356 = vld [vmem:[#allocation25 + $0x14] sm:$0xf]
        %v1357 = vld [vmem:[#allocation25 + $0x18] sm:$0xf]
        %v1358 = vld [vmem:[#allocation25 + $0x1c] sm:$0xf]
        %v1359 = vld [vmem:[#allocation25 + $0x20] sm:$0xf]
        %v1360 = vld [vmem:[#allocation25 + $0x24] sm:$0xf]
        %v1361 = vld [vmem:[#allocation25 + $0x28] sm:$0xf]
        %v1362 = vld [vmem:[#allocation25 + $0x2c] sm:$0xf]
        %v1363 = vld [vmem:[#allocation25 + $0x30] sm:$0xf]
        %v1364 = vld [vmem:[#allocation25 + $0x34] sm:$0xf]
        %v1365 = vld [vmem:[#allocation25 + $0x38] sm:$0xf]
        %v1366 = vld [vmem:[#allocation25 + $0x3c] sm:$0xf]
        %v1367 = vld [vmem:[#allocation26] sm:$0x1]
        %v1368 = vpack.c.bf16 %v1331, %v1331
        %v1370 = vlaneseq
        %v1371 = vshrl.u32 %v1370, 7
        %v1372 = vsub.s32 0, %v1371
        %v1373 = vrot.slane %v1348, %v1372
        %v1391 = vunpack.c.l.b16 %v1332
        %v1392 = vunpack.c.l.b16 %v1333
        %v1393 = vunpack.c.l.b16 %v1334
        %v1394 = vunpack.c.l.b16 %v1335
        %v1395 = vunpack.c.l.b16 %v1336
        %v1396 = vunpack.c.l.b16 %v1337
        %v1397 = vunpack.c.l.b16 %v1338
        %v1398 = vunpack.c.l.b16 %v1339
        %v1399 = vunpack.c.l.b16 %v1340
        %v1400 = vunpack.c.l.b16 %v1341
        %v1401 = vunpack.c.l.b16 %v1342
        %v1402 = vunpack.c.l.b16 %v1343
        %v1403 = vunpack.c.l.b16 %v1344
        %v1404 = vunpack.c.l.b16 %v1345
        %v1405 = vunpack.c.l.b16 %v1346
        %v1406 = vunpack.c.l.b16 %v1347
        %v1407 = vpack.c.b16 %v1392, %v1391
        %v1408 = vpack.c.b16 %v1394, %v1393
        %v1409 = vpack.c.b16 %v1396, %v1395
        %v1410 = vpack.c.b16 %v1398, %v1397
        %v1411 = vpack.c.b16 %v1400, %v1399
        %v1412 = vpack.c.b16 %v1402, %v1401
        %v1413 = vpack.c.b16 %v1404, %v1403
        %v1414 = vpack.c.b16 %v1406, %v1405
        %1423 = vmatprep.subr.bf16.mxu0 0
        %1424 = vmatpush1.bf16.msra.mxu0 %v1407
        %1425 = vmatprep.subr.bf16.mxu0 0
        %1426 = vmatpush1.bf16.msra.mxu0 %v1408
        %1427 = vmatprep.subr.bf16.mxu0 0
        %1428 = vmatpush1.bf16.msra.mxu0 %v1409
        %1429 = vmatprep.subr.bf16.mxu0 0
        %1430 = vmatpush1.bf16.msra.mxu0 %v1410
        %1431 = vmatprep.subr.bf16.mxu0 0
        %1432 = vmatpush1.bf16.msra.mxu0 %v1411
        %1433 = vmatprep.subr.bf16.mxu0 0
        %1434 = vmatpush1.bf16.msra.mxu0 %v1412
        %1435 = vmatprep.subr.bf16.mxu0 0
        %1436 = vmatpush1.bf16.msra.mxu0 %v1413
        %1437 = vmatprep.subr.bf16.mxu0 0
        %1438 = vmatpush1.bf16.msra.mxu0 %v1414
        %1439 = vmatprep.subr.bf16.mxu0 0
        %1440 = vmatpush1.bf16.msra.mxu0 0
        %1441 = vmatprep.subr.bf16.mxu0 0
        %1442 = vmatpush1.bf16.msra.mxu0 0
        %1443 = vmatprep.subr.bf16.mxu0 0
        %1444 = vmatpush1.bf16.msra.mxu0 0
        %1445 = vmatprep.subr.bf16.mxu0 0
        %1446 = vmatpush1.bf16.msra.mxu0 0
        %1447 = vmatprep.subr.bf16.mxu0 0
        %1448 = vmatpush1.bf16.msra.mxu0 0
        %1449 = vmatprep.subr.bf16.mxu0 0
        %1450 = vmatpush1.bf16.msra.mxu0 0
        %1451 = vmatprep.subr.bf16.mxu0 0
        %1452 = vmatpush1.bf16.msra.mxu0 0
        %1453 = vmatprep.subr.bf16.mxu0 0
        %1454 = vmatpush1.bf16.msra.mxu0 0
        %1455 = vmatprep.mubr.bf16.mxu0 0
        %1456 = vmatmul.mubr.bf16.gmra.mrb[0].mxu0 %v1368
        %v1457 = vpop.f32.mrb[0].mxu0
        %v1458 = vadd.f32 %v1373, %v1457
        %v1459 = vpop.f32.mrb[0].mxu0
        %v1460 = vpop.f32.mrb[0].mxu0
        %v1461 = vpop.f32.mrb[0].mxu0
        %1462 = vdwg.mxu0
        %1463 = vadd.xlane.f32.xlu0 %v1458
        %v1464 = vpop.xlane.xlu0 %1463
        %v1465 = vmul.f32 %v1464, 0.015625
        %v1466 = vsub.f32 %v1458, %v1465
        %v1467 = vmul.f32 %v1466, %v1466
        %v1468 = vsel %vm931, %v1467, 0.0
        %1469 = vadd.xlane.f32.xlu0 %v1468
        %v1470 = vpop.xlane.xlu0 %1469
        %v1471 = vmul.f32 %v1470, 0.015625
        %v1472 = vadd.f32 %v1471, 1e-05
        %v1473 = vrsqrt.pop %v1472
        %v1474 = vmul.f32 %v1466, %v1473
        %v1476 = vlaneseq
        %v1477 = vshrl.u32 %v1476, 7
        %v1478 = vsub.s32 0, %v1477
        %v1479 = vrot.slane %v1349, %v1478
        %v1481 = vmul.f32 %v1474, %v1479
        %v1483 = vlaneseq
        %v1484 = vshrl.u32 %v1483, 7
        %v1485 = vsub.s32 0, %v1484
        %v1486 = vrot.slane %v1350, %v1485
        %v1488 = vadd.f32 %v1481, %v1486
        %v1489 = vmul.f32 %v1488, 0.5
        %v1490 = vmul.f32 %v1488, 0.044715
        %v1491 = vmul.f32 %v1490, %v1488
        %v1492 = vmul.f32 %v1491, %v1488
        %v1493 = vadd.f32 %v1488, %v1492
        %v1494 = vmul.f32 %v1493, 0.7978846
        %v1495 = vtanh.pop %v1494
        %v1496 = vadd.f32 %v1495, 1.0
        %v1497 = vmul.f32 %v1489, %v1496
        %v1498 = vpack.c.bf16 %v1497, %v1497
        %v1500 = vlaneseq
        %v1501 = vshrl.u32 %v1500, 7
        %v1502 = vsub.s32 0, %v1501
        %v1503 = vrot.slane %v1367, %v1502
        %v1521 = vunpack.c.l.b16 %v1351
        %v1522 = vunpack.c.l.b16 %v1352
        %v1523 = vunpack.c.l.b16 %v1353
        %v1524 = vunpack.c.l.b16 %v1354
        %v1525 = vunpack.c.l.b16 %v1355
        %v1526 = vunpack.c.l.b16 %v1356
        %v1527 = vunpack.c.l.b16 %v1357
        %v1528 = vunpack.c.l.b16 %v1358
        %v1529 = vunpack.c.l.b16 %v1359
        %v1530 = vunpack.c.l.b16 %v1360
        %v1531 = vunpack.c.l.b16 %v1361
        %v1532 = vunpack.c.l.b16 %v1362
        %v1533 = vunpack.c.l.b16 %v1363
        %v1534 = vunpack.c.l.b16 %v1364
        %v1535 = vunpack.c.l.b16 %v1365
        %v1536 = vunpack.c.l.b16 %v1366
        %v1537 = vpack.c.b16 %v1522, %v1521
        %v1538 = vpack.c.b16 %v1524, %v1523
        %v1539 = vpack.c.b16 %v1526, %v1525
        %v1540 = vpack.c.b16 %v1528, %v1527
        %v1541 = vpack.c.b16 %v1530, %v1529
        %v1542 = vpack.c.b16 %v1532, %v1531
        %v1543 = vpack.c.b16 %v1534, %v1533
        %v1544 = vpack.c.b16 %v1536, %v1535
        %1553 = vmatprep.subr.bf16.mxu0 0
        %1554 = vmatpush1.bf16.msra.mxu0 %v1537
        %1555 = vmatprep.subr.bf16.mxu0 0
        %1556 = vmatpush1.bf16.msra.mxu0 %v1538
        %1557 = vmatprep.subr.bf16.mxu0 0
        %1558 = vmatpush1.bf16.msra.mxu0 %v1539
        %1559 = vmatprep.subr.bf16.mxu0 0
        %1560 = vmatpush1.bf16.msra.mxu0 %v1540
        %1561 = vmatprep.subr.bf16.mxu0 0
        %1562 = vmatpush1.bf16.msra.mxu0 %v1541
        %1563 = vmatprep.subr.bf16.mxu0 0
        %1564 = vmatpush1.bf16.msra.mxu0 %v1542
        %1565 = vmatprep.subr.bf16.mxu0 0
        %1566 = vmatpush1.bf16.msra.mxu0 %v1543
        %1567 = vmatprep.subr.bf16.mxu0 0
        %1568 = vmatpush1.bf16.msra.mxu0 %v1544
        %1569 = vmatprep.subr.bf16.mxu0 0
        %1570 = vmatpush1.bf16.msra.mxu0 0
        %1571 = vmatprep.subr.bf16.mxu0 0
        %1572 = vmatpush1.bf16.msra.mxu0 0
        %1573 = vmatprep.subr.bf16.mxu0 0
        %1574 = vmatpush1.bf16.msra.mxu0 0
        %1575 = vmatprep.subr.bf16.mxu0 0
        %1576 = vmatpush1.bf16.msra.mxu0 0
        %1577 = vmatprep.subr.bf16.mxu0 0
        %1578 = vmatpush1.bf16.msra.mxu0 0
        %1579 = vmatprep.subr.bf16.mxu0 0
        %1580 = vmatpush1.bf16.msra.mxu0 0
        %1581 = vmatprep.subr.bf16.mxu0 0
        %1582 = vmatpush1.bf16.msra.mxu0 0
        %1583 = vmatprep.subr.bf16.mxu0 0
        %1584 = vmatpush1.bf16.msra.mxu0 0
        %1585 = vmatprep.mubr.bf16.mxu0 0
        %1586 = vmatmul.mubr.bf16.gmra.mrb[0].mxu0 %v1498
        %v1587 = vpop.f32.mrb[0].mxu0
        %v1588 = vadd.f32 %v1503, %v1587
        %v1589 = vpop.f32.mrb[0].mxu0
        %v1590 = vpop.f32.mrb[0].mxu0
        %v1591 = vpop.f32.mrb[0].mxu0
        %1592 = vdwg.mxu0
        %v1593 = vmul.f32 %v1588, %v1588
        %1594 = vadd.xlane.f32.xlu0 %v1593
        %v1595 = vpop.xlane.xlu0 %1594
        %v1596 = vrsqrt.pop %v1595
        %v1597 = vmul.f32 %v1595, %v1596
        %vm1598 = vcmp.eq.f32.partialorder %v1595, inf
        %v1599 = vsel %vm1598, %v1595, %v1597
        %vm1600 = vcmp.eq.f32.partialorder %v1595, 0.0
        %v1601 = vand.u32 %v1595, 2147483648
        %v1602 = vsel %vm1600, %v1601, %v1599
        %v1603 = vtanh.pop %v1602
        %v1604 = vmax.f32 %v1602, 1e-05
        %v1605 = vrcp.pop %v1604
        %v1606 = vmul.f32 %v1603, %v1605
        %v1607 = vmul.f32 %v1606, %v1588
        %1608 = vst [vmem:[%s765] sm:$0xff] %v1607
        %s1609 = sand.u32 %s395, 1
        %s1610 = scalar_lea.sflag [#allocation4], %s1609
        %s1611 = sand.u32 %s395, 1
        %s1612 = smul.addr %s1611, 8
        %s1613 = scalar_lea.vmem [#allocation28], %s1612
        %s1614 = sand.u32 %s421, 1
        %s1615 = scalar_lea.sflag [#allocation30], %s1614
        %s1616 = sand.u32 %s421, 1
        %s1617 = smul.addr %s1616, 8
        %s1618 = scalar_lea.vmem [#allocation29], %s1617
        // Predicated region
        $region156: #{tpu_custom_call.1} parent=83 // pred_check
          %p1619 = pneg %p405
        $region157: #{tpu_custom_call.1} parent=83 // pred_check_branch
          %1621 = sbr.rel (%p1619) target = $region159
        $region158: #{tpu_custom_call.1} parent=83 // pred_region
          %s1623 = ssub.s32 128, 128
          %1624 = vsyncadd %s1610, %s1623
          %s1625 = smul.addr %s46, 128
          %s1626 = scalar_lea.hbm %s16, %s1625
          %s1628 = sshll.u32 %s1613, 4
          %s1629 = int_to_ptr.vmem [resolvable:$true] %s1628
          %1631 = dma.vmem_to_hbm [thread:$0]  %s1629, 128, %s1626, %s1610
        $region159: #{tpu_custom_call.1} parent=83 // pred_fallthru
          _
        // Predicated region
        $region160: #{tpu_custom_call.1} parent=83 // pred_check
          %p1632 = pneg %p431
        $region161: #{tpu_custom_call.1} parent=83 // pred_check_branch
          %1634 = sbr.rel (%p1632) target = $region163
        $region162: #{tpu_custom_call.1} parent=83 // pred_region
          %s1636 = ssub.s32 128, 128
          %1637 = vsyncadd %s1615, %s1636
          %s1638 = smul.addr %s46, 128
          %s1639 = scalar_lea.hbm %s17, %s1638
          %s1641 = sshll.u32 %s1618, 4
          %s1642 = int_to_ptr.vmem [resolvable:$true] %s1641
          %1644 = dma.vmem_to_hbm [thread:$0]  %s1642, 128, %s1639, %s1615
        $region163: #{tpu_custom_call.1} parent=83 // pred_fallthru
          _
      $region84: #{tpu_custom_call.1} parent=5 // pred_fallthru
        _
      %p1645 = scmp.le.s32.totalorder 2, %s41
      // Predicated region
      $region164: #{tpu_custom_call.1} parent=5 // pred_check
        %p1646 = pneg %p1645
      $region165: #{tpu_custom_call.1} parent=5 // pred_check_branch
        %1648 = sbr.rel (%p1646) target = $region167
      $region166: #{tpu_custom_call.1} parent=5 // pred_region
        %s1649 = ssub.s32 %s41, 2
        // Predicated region
        $region168: #{tpu_custom_call.1} parent=166 // pred_check
          %p1650 = pneg %p411
        $region169: #{tpu_custom_call.1} parent=166 // pred_check_branch
          %1652 = sbr.rel (%p1650) target = $region171
        $region170: #{tpu_custom_call.1} parent=166 // pred_region
          %s1653 = sand.u32 %s396, 1
          %s1654 = scalar_lea.sflag [#allocation4], %s1653
          %s1655 = sand.u32 %s396, 1
          %s1656 = smul.addr %s1655, 8
          %s1657 = scalar_lea.vmem [#allocation28], %s1656
          %1658 = dma.done %s1654, 128
        $region171: #{tpu_custom_call.1} parent=166 // pred_fallthru
          _
        // Predicated region
        $region172: #{tpu_custom_call.1} parent=166 // pred_check
          %p1659 = pneg %p437
        $region173: #{tpu_custom_call.1} parent=166 // pred_check_branch
          %1661 = sbr.rel (%p1659) target = $region175
        $region174: #{tpu_custom_call.1} parent=166 // pred_region
          %s1662 = sand.u32 %s422, 1
          %s1663 = scalar_lea.sflag [#allocation30], %s1662
          %s1664 = sand.u32 %s422, 1
          %s1665 = smul.addr %s1664, 8
          %s1666 = scalar_lea.vmem [#allocation29], %s1665
          %1667 = dma.done %s1663, 128
        $region175: #{tpu_custom_call.1} parent=166 // pred_fallthru
          _
      $region167: #{tpu_custom_call.1} parent=5 // pred_fallthru
        _
    $region6: #{tpu_custom_call.1} parent=1 // loop_footer
      %s45 = sadd.s32 1, %s41
    $region7: #{tpu_custom_call.1} parent=1 // loop_footer_branch
      %40 = sbr.rel target = $region3
    $region8: #{tpu_custom_call.1} parent=1 // loop_exit
      _
    %1668 = vsyncpa [#allocation3], 1
    %s1669 = scalar_lea.sflag [#allocation3], 1
    %1670 = vsyncpa %s1669, 1
    %1671 = vsyncpa [#allocation6], 1
    %1672 = vsyncpa [#allocation9], 1
    %1673 = vsyncpa [#allocation12], 1
    %1674 = vsyncpa [#allocation15], 1
    %1675 = vsyncpa [#allocation18], 1
    %1676 = vsyncpa [#allocation21], 1
    %1677 = vsyncpa [#allocation24], 1
    %1678 = vsyncpa [#allocation27], 1
    %1679 = vsyncpa [#allocation4], 1
    %s1680 = scalar_lea.sflag [#allocation4], 1
    %1681 = vsyncpa %s1680, 1
    %1682 = vsyncpa [#allocation30], 1
    %s1683 = scalar_lea.sflag [#allocation30], 1
    %1684 = vsyncpa %s1683, 1

</llo_original>
